<compile_context>
chip_gen: v7x
topology: tpu7x:2x2x1
jax: 0.10.0
libtpu: 0.0.40
codegen_flags: <defaults>
</compile_context>

<pallas_src>
import jax
import jax.numpy as jnp
from jax.experimental import pallas as pl
from jax.experimental.pallas import tpu as pltpu


def _conv1x1_kernel(w_ref, x_ref, o_ref):
    # w_ref: [TILE_COUT, Cin] weight tile (the only big DMA stream),
    # x_ref:  [Cin, M] full activation (resident in VMEM),
    # o_ref: [TILE_COUT, M] output tile.  One MXU matmul, f32 accumulate.
    o_ref[...] = jnp.dot(
        w_ref[...], x_ref[...], preferred_element_type=jnp.float32
    ).astype(o_ref.dtype)


def _pick_tile_cout(cout, target_steps=2):
    """Prefer `target_steps` equal Cout tiles (rows multiple of 8 for sublane
    alignment); otherwise fall back to a single full-size tile."""
    if cout % target_steps == 0:
        t = cout // target_steps
        if t % 8 == 0:
            return t
    return cout


def conv2d_1x1(x_nchw, weight_oihw):
    """1x1 conv, stride 1, no bias.  x: [N, Cin, H, W], weight: [Cout, Cin, 1, 1]."""
    n, cin, h, w = x_nchw.shape
    cout = weight_oihw.shape[0]
    assert weight_oihw.shape == (cout, cin, 1, 1)
    m = n * h * w

    # GEMM views:  W2 [Cout, Cin] @ Xt [Cin, M] -> [Cout, M]
    w2 = weight_oihw.reshape(cout, cin)            # bitcast, no data movement
    if n == 1:
        xt = x_nchw.reshape(cin, m)                # bitcast (module's case)
    else:
        # General fallback (not hit by the module's shape): NCHW -> [Cin, N*H*W]
        xt = jnp.transpose(x_nchw, (1, 0, 2, 3)).reshape(cin, m)

    tile_cout = _pick_tile_cout(cout)
    grid = (cout // tile_cout,)

    itemsize = jnp.dtype(x_nchw.dtype).itemsize
    cost = pl.CostEstimate(
        flops=2 * cout * cin * m,
        transcendentals=0,
        bytes_accessed=(cout * cin + cin * m + cout * m) * itemsize,
    )

    out2d = pl.pallas_call(
        _conv1x1_kernel,
        out_shape=jax.ShapeDtypeStruct((cout, m), x_nchw.dtype),
        grid_spec=pltpu.PrefetchScalarGridSpec(
            num_scalar_prefetch=0,
            grid=grid,
            in_specs=[
                # Cout-tiled weight: double-buffered by the Pallas pipeline.
                pl.BlockSpec((tile_cout, cin), lambda j: (j, 0)),
                # Full X every step; constant index_map -> DMA'd once, stays in VMEM.
                pl.BlockSpec((cin, m), lambda j: (0, 0)),
            ],
            out_specs=pl.BlockSpec((tile_cout, m), lambda j: (j, 0)),
        ),
        compiler_params=pltpu.CompilerParams(
            # Independent Cout halves: sharded across the 2 TCs on v7x,
            # plain low-overhead sequential loop on v5e/v6e.
            dimension_semantics=("parallel",),
        ),
        cost_estimate=cost,
    )(w2, xt)

    if n == 1:
        return out2d.reshape(1, cout, h, w)        # bitcast, no data movement
    return jnp.transpose(out2d.reshape(cout, n, h, w), (1, 0, 2, 3))


if __name__ == "__main__":
    key = jax.random.PRNGKey(0)
    kx, kw = jax.random.split(key)

    # Shapes implied by the module's forward: x754 = [1, 384, 7, 7] -> [1, 2304, 7, 7]
    N, CIN, H, W = 1, 384, 7, 7
    COUT = 2304

    x = jax.random.normal(kx, (N, CIN, H, W), dtype=jnp.float32)
    # Deterministic weight init for Conv2d(384, 2304, 1, 1, bias=False)
    weight = jax.random.normal(kw, (COUT, CIN, 1, 1), dtype=jnp.float32) * 0.02

    out = conv2d_1x1(x, weight)
    out = jax.block_until_ready(out)

    # Reference check in plain JAX (1x1 conv == per-pixel channel matmul)
    ref = jnp.einsum("nchw,oc->nohw", x, weight.reshape(COUT, CIN))
    assert out.shape == (N, COUT, H, W), out.shape
    assert jnp.allclose(out, ref, atol=1e-3, rtol=1e-3)

    print("KERNEL_OK")
</pallas_src>

<mosaic_0001>
module attributes {stable_mosaic.version = 11 : i64} {
  func.func @_conv1x1_kernel(%arg0: i32, %arg1: memref<1152x384xf32, #tpu.memory_space<vmem>>, %arg2: memref<384x49xf32, #tpu.memory_space<vmem>>, %arg3: memref<1152x49xf32, #tpu.memory_space<vmem>>) attributes {dimension_semantics = [#tpu.dimension_semantics<parallel>], iteration_bounds = array<i64: 2>, scalar_prefetch = 0 : i64, scratch_operands = 0 : i64, tpu.core_type = #tpu.core_type<tc>, window_params = [{transform_indices = @transform_0, window_bounds = array<i64: 1152, 384>}, {pipeline_mode = #tpu.pipeline_mode<synchronous>, transform_indices = @transform_1, window_bounds = array<i64: 384, 49>}, {transform_indices = @transform_2, window_bounds = array<i64: 1152, 49>}]} {
    %c0 = arith.constant 0 : index
    %c0_0 = arith.constant 0 : index
    %0 = vector.load %arg1[%c0, %c0_0] : memref<1152x384xf32, #tpu.memory_space<vmem>>, vector<1152x384xf32>
    %c0_1 = arith.constant 0 : index
    %c0_2 = arith.constant 0 : index
    %1 = vector.load %arg2[%c0_1, %c0_2] : memref<384x49xf32, #tpu.memory_space<vmem>>, vector<384x49xf32>
    %cst = arith.constant dense<0.000000e+00> : vector<1152x49xf32>
    %2 = tpu.matmul %0, %1, %cst {dimension_numbers = #tpu.dot_dimension_numbers<[1], [0], [0], [1], [0, 0, 1, 1], [], []>} : vector<1152x384xf32>, vector<384x49xf32>, vector<1152x49xf32> -> vector<1152x49xf32>
    %c0_3 = arith.constant 0 : index
    %c0_4 = arith.constant 0 : index
    %3 = vector.load %arg3[%c0_3, %c0_4] : memref<1152x49xf32, #tpu.memory_space<vmem>>, vector<1152x49xf32>
    tpu.vector_store %arg3[%c0_3, %c0_4], %2 {strides = array<i32>} : memref<1152x49xf32, #tpu.memory_space<vmem>>, vector<1152x49xf32>,
    return
  }
  func.func @transform_0(%arg0: i32) -> (i32, i32) {
    %c0_i32 = arith.constant 0 : i32
    %c0_i32_0 = arith.constant 0 : i32
    return %arg0, %c0_i32 : i32, i32
  }
  func.func @transform_1(%arg0: i32) -> (i32, i32) {
    %c0_i32 = arith.constant 0 : i32
    %c0_i32_0 = arith.constant 0 : i32
    %c0_i32_1 = arith.constant 0 : i32
    return %c0_i32, %c0_i32_0 : i32, i32
  }
  func.func @transform_2(%arg0: i32) -> (i32, i32) {
    %c0_i32 = arith.constant 0 : i32
    %c0_i32_0 = arith.constant 0 : i32
    return %arg0, %c0_i32 : i32, i32
  }
}

</mosaic_0001>

<llo_original>
// kernel: tpu_custom_call.1
$region0: #{tpu_custom_call.1}
  #allocation0 [shape = 'u32[]', space=smem, size = 0x4, offset = 0x4, fixed_abs, tag = 'smem constant byte address 0x4 - core index']
  #allocation1 [shape = 'u32[144,128]{1,0:T(1,128)}', space=vmem, size = 0x12000, scoped, tag = 'internal scratch']
  %s0 = inlined_call_operand.hbm [shape: f32[2304,384], index: 0, kind: input, shape index: {}]
  %s1 = inlined_call_operand.vmem [shape: f32[384,49], index: 1, kind: input, shape index: {}]
  %s2 = inlined_call_operand.vmem [shape: f32[2304,49], index: 2, kind: output, shape index: {}]
  %s3 = sld [smem:[#allocation0]]
  $region45: #{tpu_custom_call.1} parent=0
    _
  %s5 = ssub.s32 1, %s3
  %s6 = scalar_select 0, %s5, %s3
  $region1: #{tpu_custom_call.1} parent=0
    #allocation2 [shape = 'u8[3538944]{0}', space=vmem, size = 0x360000, scoped, tag = 'input window, operand 0']
    #allocation3 [shape = 's32[2]{0}', space=sflag, size = 0x8, scoped, tag = 'scoped memory for tpu_custom_call.1']
    %7 = vsyncpa [#allocation3], 0
    %s8 = scalar_lea.sflag [#allocation3], 1
    %9 = vsyncpa %s8, 0
    loop: start=0, step=1, limit=4
    $region2: #{tpu_custom_call.1} parent=1 // loop_pre_header
      _
    $region3: #{tpu_custom_call.1} parent=1 // loop_header
      %s11 = sphi 0, %s15
      %p12 = scmp.ge.s32.totalorder %s11, 4
      %s21 = sphi 0, %s23
      %s24 = sphi 0, %s21
      %s25 = sphi 0, %s24
      %s41 = sphi 0, %s25
      %s45 = sphi 0, %s45
      %s47 = sphi 0, %s45
      %s48 = sphi 0, %s47
      %s62 = sphi 0, %s48
      %s68 = sphi 0, %s70
      %s71 = sphi 0, %s68
      %s72 = sphi 0, %s71
      %s88 = sphi 0, %s72
    $region4: #{tpu_custom_call.1} parent=1 // loop_header_branch
      %14 = sbr.rel (%p12) target = $region8
    $region5: #{tpu_custom_call.1} parent=1 // loop_body
      %s16 = ssub.s32 %s11, 1
      %s17 = ssub.s32 %s11, 2
      %s18 = sadd.s32 %s11, 1
      %s19 = ssub.s32 %s11, %s18
      %p20 = scmp.eq.s32.totalorder %s19, 0
      %s22 = sadd.s32 %s21, 1
      %s23 = scalar_select %p20, %s21, %s22
      %p26 = pneg %p20
      %p27 = scmp.eq.s32.totalorder %s11, 1
      %p28 = por %p26, %p27
      %p29 = scmp.ne.s32.totalorder %s21, %s24
      %p30 = scmp.eq.s32.totalorder %s11, 0
      %p31 = por %p29, %p30
      %p32 = scmp.ne.s32.totalorder %s21, %s24
      %p33 = scmp.eq.s32.totalorder %s16, 1
      %p34 = por %p32, %p33
      %p35 = scmp.ne.s32.totalorder %s24, %s25
      %p36 = scmp.eq.s32.totalorder %s16, 0
      %p37 = por %p35, %p36
      %p38 = scmp.ne.s32.totalorder %s24, %s25
      %p39 = scmp.eq.s32.totalorder %s17, 1
      %p40 = por %p38, %p39
      %p42 = scmp.ne.s32.totalorder %s25, %s41
      %p43 = scmp.eq.s32.totalorder %s17, 0
      %p44 = por %p42, %p43
      %s46 = sadd.s32 %s45, 1
      %p49 = scmp.eq.s32.totalorder %s11, 1
      %p50 = scmp.ne.s32.totalorder %s45, %s47
      %p51 = scmp.eq.s32.totalorder %s11, 0
      %p52 = por %p50, %p51
      %p53 = scmp.ne.s32.totalorder %s45, %s47
      %p54 = scmp.eq.s32.totalorder %s16, 1
      %p55 = por %p53, %p54
      %p56 = scmp.ne.s32.totalorder %s47, %s48
      %p57 = scmp.eq.s32.totalorder %s16, 0
      %p58 = por %p56, %p57
      %p59 = scmp.ne.s32.totalorder %s47, %s48
      %p60 = scmp.eq.s32.totalorder %s17, 1
      %p61 = por %p59, %p60
      %p63 = scmp.ne.s32.totalorder %s48, %s62
      %p64 = scmp.eq.s32.totalorder %s17, 0
      %p65 = por %p63, %p64
      %s66 = ssub.s32 %s11, %s18
      %p67 = scmp.eq.s32.totalorder %s66, 0
      %s69 = sadd.s32 %s68, 1
      %s70 = scalar_select %p67, %s68, %s69
      %p73 = pneg %p67
      %p74 = scmp.eq.s32.totalorder %s11, 1
      %p75 = por %p73, %p74
      %p76 = scmp.ne.s32.totalorder %s68, %s71
      %p77 = scmp.eq.s32.totalorder %s11, 0
      %p78 = por %p76, %p77
      %p79 = scmp.ne.s32.totalorder %s68, %s71
      %p80 = scmp.eq.s32.totalorder %s16, 1
      %p81 = por %p79, %p80
      %p82 = scmp.ne.s32.totalorder %s71, %s72
      %p83 = scmp.eq.s32.totalorder %s16, 0
      %p84 = por %p82, %p83
      %p85 = scmp.ne.s32.totalorder %s71, %s72
      %p86 = scmp.eq.s32.totalorder %s17, 1
      %p87 = por %p85, %p86
      %p89 = scmp.ne.s32.totalorder %s72, %s88
      %p90 = scmp.eq.s32.totalorder %s17, 0
      %p91 = por %p89, %p90
      %p92 = scmp.le.s32.totalorder 1, %s11
      %p93 = scmp.lt.s32.totalorder %s11, 3
      %p94 = pnand %p92, %p93
      %p95 = pneg %p94
      // Predicated region
      $region9: #{tpu_custom_call.1} parent=5 // pred_check
        _
      $region10: #{tpu_custom_call.1} parent=5 // pred_check_branch
        %97 = sbr.rel (%p94) target = $region12
      $region11: #{tpu_custom_call.1} parent=5 // pred_region
        %s98 = ssub.s32 %s11, 1
        // Predicated region
        $region13: #{tpu_custom_call.1} parent=11 // pred_check
          %p99 = pneg %p58
        $region14: #{tpu_custom_call.1} parent=11 // pred_check_branch
          %101 = sbr.rel (%p99) target = $region16
        $region15: #{tpu_custom_call.1} parent=11 // pred_region
          _
        $region16: #{tpu_custom_call.1} parent=11 // pred_fallthru
          _
      $region12: #{tpu_custom_call.1} parent=5 // pred_fallthru
        _
      %p102 = scmp.lt.s32.totalorder %s11, 2
      // Predicated region
      $region17: #{tpu_custom_call.1} parent=5 // pred_check
        %p103 = pneg %p102
      $region18: #{tpu_custom_call.1} parent=5 // pred_check_branch
        %105 = sbr.rel (%p103) target = $region20
      $region19: #{tpu_custom_call.1} parent=5 // pred_region
        // Predicated region
        $region21: #{tpu_custom_call.1} parent=19 // pred_check
          %p106 = pneg %p31
        $region22: #{tpu_custom_call.1} parent=19 // pred_check_branch
          %108 = sbr.rel (%p106) target = $region24
        $region23: #{tpu_custom_call.1} parent=19 // pred_region
          %s109 = sand.u32 %s21, 1
          %s110 = scalar_lea.sflag [#allocation3], %s109
          %s111 = sand.u32 %s21, 1
          %s112 = smul.addr %s111, 3456
          %s113 = scalar_lea.vmem [#allocation2], %s112
          %s114 = smul.u32 144, %s11
          %s116 = ssub.s32 55296, 55296
          %117 = vsyncadd %s110, %s116
          %s118 = smul.addr %s114, 3
          %s119 = smul.addr %s118, 128
          %s120 = scalar_lea.hbm %s0, %s119
          %s121 = sshll.u32 %s113, 4
          %s122 = int_to_ptr.vmem [resolvable:$true] %s121
          %127 = dma.hbm_to_vmem [thread:$0]  %s120, 55296, %s122, %s110, 384, 384, 24
        $region24: #{tpu_custom_call.1} parent=19 // pred_fallthru
          _
      $region20: #{tpu_custom_call.1} parent=5 // pred_fallthru
        _
      %p128 = scmp.le.s32.totalorder 1, %s11
      %p129 = scmp.lt.s32.totalorder %s11, 3
      %p130 = pnand %p128, %p129
      %p131 = pneg %p130
      // Predicated region
      $region25: #{tpu_custom_call.1} parent=5 // pred_check
        _
      $region26: #{tpu_custom_call.1} parent=5 // pred_check_branch
        %133 = sbr.rel (%p130) target = $region28
      $region27: #{tpu_custom_call.1} parent=5 // pred_region
        %s134 = ssub.s32 %s11, 1
        %s135 = sand.u32 %s24, 1
        %s136 = scalar_lea.sflag [#allocation3], %s135
        %s137 = sand.u32 %s24, 1
        %s138 = smul.addr %s137, 3456
        %s139 = scalar_lea.vmem [#allocation2], %s138
        // Predicated region
        $region29: #{tpu_custom_call.1} parent=27 // pred_check
          %p140 = pneg %p37
        $region30: #{tpu_custom_call.1} parent=27 // pred_check_branch
          %142 = sbr.rel (%p140) target = $region32
        $region31: #{tpu_custom_call.1} parent=27 // pred_region
          %143 = dma.done %s136, 55296
        $region32: #{tpu_custom_call.1} parent=27 // pred_fallthru
          _
        %s144 = sand.u32 %s24, 1
        %s145 = scalar_lea.sflag [#allocation3], %s144
        %s146 = sand.u32 %s24, 1
        %s147 = smul.addr %s146, 3456
        %s148 = scalar_lea.vmem [#allocation2], %s147
        %p149 = pneg %p37
        %p150 = pneg %p34
        %p151 = pneg %p58
        %p152 = pneg %p55
        %p153 = pneg %p84
        %p154 = pneg %p81
        %s155 = smul.u32 144, %s16
        %p156 = scmp.lt.s32.totalorder %s155, 287
        %s157 = scalar_select %p156, %s155, 287
        %s158 = smul.addr %s157, 8
        %s159 = scalar_lea.vmem %s2, %s158
        %s160 = smul.u32 144, %s16
        %s161 = smul.u32 144, %s16
        %p162 = scmp.lt.s32.totalorder %s161, 287
        %s163 = scalar_select %p162, %s161, 287
        %s164 = smul.addr %s163, 8
        %s165 = scalar_lea.vmem %s2, %s164
        %s166 = smul.u32 144, %s16
        %v167 = vld [vmem:[%s139] sm:$0xff]
        %v168 = vld [vmem:[%s139 + $0x8] sm:$0xff]
        %v169 = vld [vmem:[%s139 + $0x10] sm:$0xff]
        %v170 = vld [vmem:[%s139 + $0x18] sm:$0xff]
        %v171 = vld [vmem:[%s139 + $0x20] sm:$0xff]
        %v172 = vld [vmem:[%s139 + $0x28] sm:$0xff]
        %v173 = vld [vmem:[%s139 + $0x30] sm:$0xff]
        %v174 = vld [vmem:[%s139 + $0x38] sm:$0xff]
        %v175 = vld [vmem:[%s139 + $0x40] sm:$0xff]
        %v176 = vld [vmem:[%s139 + $0x48] sm:$0xff]
        %v177 = vld [vmem:[%s139 + $0x50] sm:$0xff]
        %v178 = vld [vmem:[%s139 + $0x58] sm:$0xff]
        %v179 = vld [vmem:[%s139 + $0x60] sm:$0xff]
        %v180 = vld [vmem:[%s139 + $0x68] sm:$0xff]
        %v181 = vld [vmem:[%s139 + $0x70] sm:$0xff]
        %v182 = vld [vmem:[%s139 + $0x78] sm:$0xff]
        %v183 = vld [vmem:[%s139 + $0x80] sm:$0xff]
        %v184 = vld [vmem:[%s139 + $0x88] sm:$0xff]
        %v185 = vld [vmem:[%s139 + $0x90] sm:$0xff]
        %v186 = vld [vmem:[%s139 + $0x98] sm:$0xff]
        %v187 = vld [vmem:[%s139 + $0xa0] sm:$0xff]
        %v188 = vld [vmem:[%s139 + $0xa8] sm:$0xff]
        %v189 = vld [vmem:[%s139 + $0xb0] sm:$0xff]
        %v190 = vld [vmem:[%s139 + $0xb8] sm:$0xff]
        %v191 = vld [vmem:[%s139 + $0xc0] sm:$0xff]
        %v192 = vld [vmem:[%s139 + $0xc8] sm:$0xff]
        %v193 = vld [vmem:[%s139 + $0xd0] sm:$0xff]
        %v194 = vld [vmem:[%s139 + $0xd8] sm:$0xff]
        %v195 = vld [vmem:[%s139 + $0xe0] sm:$0xff]
        %v196 = vld [vmem:[%s139 + $0xe8] sm:$0xff]
        %v197 = vld [vmem:[%s139 + $0xf0] sm:$0xff]
        %v198 = vld [vmem:[%s139 + $0xf8] sm:$0xff]
        %v199 = vld [vmem:[%s139 + $0x100] sm:$0xff]
        %v200 = vld [vmem:[%s139 + $0x108] sm:$0xff]
        %v201 = vld [vmem:[%s139 + $0x110] sm:$0xff]
        %v202 = vld [vmem:[%s139 + $0x118] sm:$0xff]
        %v203 = vld [vmem:[%s139 + $0x120] sm:$0xff]
        %v204 = vld [vmem:[%s139 + $0x128] sm:$0xff]
        %v205 = vld [vmem:[%s139 + $0x130] sm:$0xff]
        %v206 = vld [vmem:[%s139 + $0x138] sm:$0xff]
        %v207 = vld [vmem:[%s139 + $0x140] sm:$0xff]
        %v208 = vld [vmem:[%s139 + $0x148] sm:$0xff]
        %v209 = vld [vmem:[%s139 + $0x150] sm:$0xff]
        %v210 = vld [vmem:[%s139 + $0x158] sm:$0xff]
        %v211 = vld [vmem:[%s139 + $0x160] sm:$0xff]
        %v212 = vld [vmem:[%s139 + $0x168] sm:$0xff]
        %v213 = vld [vmem:[%s139 + $0x170] sm:$0xff]
        %v214 = vld [vmem:[%s139 + $0x178] sm:$0xff]
        %v215 = vld [vmem:[%s139 + $0x180] sm:$0xff]
        %v216 = vld [vmem:[%s139 + $0x188] sm:$0xff]
        %v217 = vld [vmem:[%s139 + $0x190] sm:$0xff]
        %v218 = vld [vmem:[%s139 + $0x198] sm:$0xff]
        %v219 = vld [vmem:[%s139 + $0x1a0] sm:$0xff]
        %v220 = vld [vmem:[%s139 + $0x1a8] sm:$0xff]
        %v221 = vld [vmem:[%s139 + $0x1b0] sm:$0xff]
        %v222 = vld [vmem:[%s139 + $0x1b8] sm:$0xff]
        %v223 = vld [vmem:[%s139 + $0x1c0] sm:$0xff]
        %v224 = vld [vmem:[%s139 + $0x1c8] sm:$0xff]
        %v225 = vld [vmem:[%s139 + $0x1d0] sm:$0xff]
        %v226 = vld [vmem:[%s139 + $0x1d8] sm:$0xff]
        %v227 = vld [vmem:[%s139 + $0x1e0] sm:$0xff]
        %v228 = vld [vmem:[%s139 + $0x1e8] sm:$0xff]
        %v229 = vld [vmem:[%s139 + $0x1f0] sm:$0xff]
        %v230 = vld [vmem:[%s139 + $0x1f8] sm:$0xff]
        %v231 = vld [vmem:[%s139 + $0x200] sm:$0xff]
        %v232 = vld [vmem:[%s139 + $0x208] sm:$0xff]
        %v233 = vld [vmem:[%s139 + $0x210] sm:$0xff]
        %v234 = vld [vmem:[%s139 + $0x218] sm:$0xff]
        %v235 = vld [vmem:[%s139 + $0x220] sm:$0xff]
        %v236 = vld [vmem:[%s139 + $0x228] sm:$0xff]
        %v237 = vld [vmem:[%s139 + $0x230] sm:$0xff]
        %v238 = vld [vmem:[%s139 + $0x238] sm:$0xff]
        %v239 = vld [vmem:[%s139 + $0x240] sm:$0xff]
        %v240 = vld [vmem:[%s139 + $0x248] sm:$0xff]
        %v241 = vld [vmem:[%s139 + $0x250] sm:$0xff]
        %v242 = vld [vmem:[%s139 + $0x258] sm:$0xff]
        %v243 = vld [vmem:[%s139 + $0x260] sm:$0xff]
        %v244 = vld [vmem:[%s139 + $0x268] sm:$0xff]
        %v245 = vld [vmem:[%s139 + $0x270] sm:$0xff]
        %v246 = vld [vmem:[%s139 + $0x278] sm:$0xff]
        %v247 = vld [vmem:[%s139 + $0x280] sm:$0xff]
        %v248 = vld [vmem:[%s139 + $0x288] sm:$0xff]
        %v249 = vld [vmem:[%s139 + $0x290] sm:$0xff]
        %v250 = vld [vmem:[%s139 + $0x298] sm:$0xff]
        %v251 = vld [vmem:[%s139 + $0x2a0] sm:$0xff]
        %v252 = vld [vmem:[%s139 + $0x2a8] sm:$0xff]
        %v253 = vld [vmem:[%s139 + $0x2b0] sm:$0xff]
        %v254 = vld [vmem:[%s139 + $0x2b8] sm:$0xff]
        %v255 = vld [vmem:[%s139 + $0x2c0] sm:$0xff]
        %v256 = vld [vmem:[%s139 + $0x2c8] sm:$0xff]
        %v257 = vld [vmem:[%s139 + $0x2d0] sm:$0xff]
        %v258 = vld [vmem:[%s139 + $0x2d8] sm:$0xff]
        %v259 = vld [vmem:[%s139 + $0x2e0] sm:$0xff]
        %v260 = vld [vmem:[%s139 + $0x2e8] sm:$0xff]
        %v261 = vld [vmem:[%s139 + $0x2f0] sm:$0xff]
        %v262 = vld [vmem:[%s139 + $0x2f8] sm:$0xff]
        %v263 = vld [vmem:[%s139 + $0x300] sm:$0xff]
        %v264 = vld [vmem:[%s139 + $0x308] sm:$0xff]
        %v265 = vld [vmem:[%s139 + $0x310] sm:$0xff]
        %v266 = vld [vmem:[%s139 + $0x318] sm:$0xff]
        %v267 = vld [vmem:[%s139 + $0x320] sm:$0xff]
        %v268 = vld [vmem:[%s139 + $0x328] sm:$0xff]
        %v269 = vld [vmem:[%s139 + $0x330] sm:$0xff]
        %v270 = vld [vmem:[%s139 + $0x338] sm:$0xff]
        %v271 = vld [vmem:[%s139 + $0x340] sm:$0xff]
        %v272 = vld [vmem:[%s139 + $0x348] sm:$0xff]
        %v273 = vld [vmem:[%s139 + $0x350] sm:$0xff]
        %v274 = vld [vmem:[%s139 + $0x358] sm:$0xff]
        %v275 = vld [vmem:[%s139 + $0x360] sm:$0xff]
        %v276 = vld [vmem:[%s139 + $0x368] sm:$0xff]
        %v277 = vld [vmem:[%s139 + $0x370] sm:$0xff]
        %v278 = vld [vmem:[%s139 + $0x378] sm:$0xff]
        %v279 = vld [vmem:[%s139 + $0x380] sm:$0xff]
        %v280 = vld [vmem:[%s139 + $0x388] sm:$0xff]
        %v281 = vld [vmem:[%s139 + $0x390] sm:$0xff]
        %v282 = vld [vmem:[%s139 + $0x398] sm:$0xff]
        %v283 = vld [vmem:[%s139 + $0x3a0] sm:$0xff]
        %v284 = vld [vmem:[%s139 + $0x3a8] sm:$0xff]
        %v285 = vld [vmem:[%s139 + $0x3b0] sm:$0xff]
        %v286 = vld [vmem:[%s139 + $0x3b8] sm:$0xff]
        %v287 = vld [vmem:[%s139 + $0x3c0] sm:$0xff]
        %v288 = vld [vmem:[%s139 + $0x3c8] sm:$0xff]
        %v289 = vld [vmem:[%s139 + $0x3d0] sm:$0xff]
        %v290 = vld [vmem:[%s139 + $0x3d8] sm:$0xff]
        %v291 = vld [vmem:[%s139 + $0x3e0] sm:$0xff]
        %v292 = vld [vmem:[%s139 + $0x3e8] sm:$0xff]
        %v293 = vld [vmem:[%s139 + $0x3f0] sm:$0xff]
        %v294 = vld [vmem:[%s139 + $0x3f8] sm:$0xff]
        %v295 = vld [vmem:[%s139 + $0x400] sm:$0xff]
        %v296 = vld [vmem:[%s139 + $0x408] sm:$0xff]
        %v297 = vld [vmem:[%s139 + $0x410] sm:$0xff]
        %v298 = vld [vmem:[%s139 + $0x418] sm:$0xff]
        %v299 = vld [vmem:[%s139 + $0x420] sm:$0xff]
        %v300 = vld [vmem:[%s139 + $0x428] sm:$0xff]
        %v301 = vld [vmem:[%s139 + $0x430] sm:$0xff]
        %v302 = vld [vmem:[%s139 + $0x438] sm:$0xff]
        %v303 = vld [vmem:[%s139 + $0x440] sm:$0xff]
        %v304 = vld [vmem:[%s139 + $0x448] sm:$0xff]
        %v305 = vld [vmem:[%s139 + $0x450] sm:$0xff]
        %v306 = vld [vmem:[%s139 + $0x458] sm:$0xff]
        %v307 = vld [vmem:[%s139 + $0x460] sm:$0xff]
        %v308 = vld [vmem:[%s139 + $0x468] sm:$0xff]
        %v309 = vld [vmem:[%s139 + $0x470] sm:$0xff]
        %v310 = vld [vmem:[%s139 + $0x478] sm:$0xff]
        %v311 = vld [vmem:[%s139 + $0x480] sm:$0xff]
        %v312 = vld [vmem:[%s139 + $0x488] sm:$0xff]
        %v313 = vld [vmem:[%s139 + $0x490] sm:$0xff]
        %v314 = vld [vmem:[%s139 + $0x498] sm:$0xff]
        %v315 = vld [vmem:[%s139 + $0x4a0] sm:$0xff]
        %v316 = vld [vmem:[%s139 + $0x4a8] sm:$0xff]
        %v317 = vld [vmem:[%s139 + $0x4b0] sm:$0xff]
        %v318 = vld [vmem:[%s139 + $0x4b8] sm:$0xff]
        %v319 = vld [vmem:[%s139 + $0x4c0] sm:$0xff]
        %v320 = vld [vmem:[%s139 + $0x4c8] sm:$0xff]
        %v321 = vld [vmem:[%s139 + $0x4d0] sm:$0xff]
        %v322 = vld [vmem:[%s139 + $0x4d8] sm:$0xff]
        %v323 = vld [vmem:[%s139 + $0x4e0] sm:$0xff]
        %v324 = vld [vmem:[%s139 + $0x4e8] sm:$0xff]
        %v325 = vld [vmem:[%s139 + $0x4f0] sm:$0xff]
        %v326 = vld [vmem:[%s139 + $0x4f8] sm:$0xff]
        %v327 = vld [vmem:[%s139 + $0x500] sm:$0xff]
        %v328 = vld [vmem:[%s139 + $0x508] sm:$0xff]
        %v329 = vld [vmem:[%s139 + $0x510] sm:$0xff]
        %v330 = vld [vmem:[%s139 + $0x518] sm:$0xff]
        %v331 = vld [vmem:[%s139 + $0x520] sm:$0xff]
        %v332 = vld [vmem:[%s139 + $0x528] sm:$0xff]
        %v333 = vld [vmem:[%s139 + $0x530] sm:$0xff]
        %v334 = vld [vmem:[%s139 + $0x538] sm:$0xff]
        %v335 = vld [vmem:[%s139 + $0x540] sm:$0xff]
        %v336 = vld [vmem:[%s139 + $0x548] sm:$0xff]
        %v337 = vld [vmem:[%s139 + $0x550] sm:$0xff]
        %v338 = vld [vmem:[%s139 + $0x558] sm:$0xff]
        %v339 = vld [vmem:[%s139 + $0x560] sm:$0xff]
        %v340 = vld [vmem:[%s139 + $0x568] sm:$0xff]
        %v341 = vld [vmem:[%s139 + $0x570] sm:$0xff]
        %v342 = vld [vmem:[%s139 + $0x578] sm:$0xff]
        %v343 = vld [vmem:[%s139 + $0x580] sm:$0xff]
        %v344 = vld [vmem:[%s139 + $0x588] sm:$0xff]
        %v345 = vld [vmem:[%s139 + $0x590] sm:$0xff]
        %v346 = vld [vmem:[%s139 + $0x598] sm:$0xff]
        %v347 = vld [vmem:[%s139 + $0x5a0] sm:$0xff]
        %v348 = vld [vmem:[%s139 + $0x5a8] sm:$0xff]
        %v349 = vld [vmem:[%s139 + $0x5b0] sm:$0xff]
        %v350 = vld [vmem:[%s139 + $0x5b8] sm:$0xff]
        %v351 = vld [vmem:[%s139 + $0x5c0] sm:$0xff]
        %v352 = vld [vmem:[%s139 + $0x5c8] sm:$0xff]
        %v353 = vld [vmem:[%s139 + $0x5d0] sm:$0xff]
        %v354 = vld [vmem:[%s139 + $0x5d8] sm:$0xff]
        %v355 = vld [vmem:[%s139 + $0x5e0] sm:$0xff]
        %v356 = vld [vmem:[%s139 + $0x5e8] sm:$0xff]
        %v357 = vld [vmem:[%s139 + $0x5f0] sm:$0xff]
        %v358 = vld [vmem:[%s139 + $0x5f8] sm:$0xff]
        %v359 = vld [vmem:[%s139 + $0x600] sm:$0xff]
        %v360 = vld [vmem:[%s139 + $0x608] sm:$0xff]
        %v361 = vld [vmem:[%s139 + $0x610] sm:$0xff]
        %v362 = vld [vmem:[%s139 + $0x618] sm:$0xff]
        %v363 = vld [vmem:[%s139 + $0x620] sm:$0xff]
        %v364 = vld [vmem:[%s139 + $0x628] sm:$0xff]
        %v365 = vld [vmem:[%s139 + $0x630] sm:$0xff]
        %v366 = vld [vmem:[%s139 + $0x638] sm:$0xff]
        %v367 = vld [vmem:[%s139 + $0x640] sm:$0xff]
        %v368 = vld [vmem:[%s139 + $0x648] sm:$0xff]
        %v369 = vld [vmem:[%s139 + $0x650] sm:$0xff]
        %v370 = vld [vmem:[%s139 + $0x658] sm:$0xff]
        %v371 = vld [vmem:[%s139 + $0x660] sm:$0xff]
        %v372 = vld [vmem:[%s139 + $0x668] sm:$0xff]
        %v373 = vld [vmem:[%s139 + $0x670] sm:$0xff]
        %v374 = vld [vmem:[%s139 + $0x678] sm:$0xff]
        %v375 = vld [vmem:[%s139 + $0x680] sm:$0xff]
        %v376 = vld [vmem:[%s139 + $0x688] sm:$0xff]
        %v377 = vld [vmem:[%s139 + $0x690] sm:$0xff]
        %v378 = vld [vmem:[%s139 + $0x698] sm:$0xff]
        %v379 = vld [vmem:[%s139 + $0x6a0] sm:$0xff]
        %v380 = vld [vmem:[%s139 + $0x6a8] sm:$0xff]
        %v381 = vld [vmem:[%s139 + $0x6b0] sm:$0xff]
        %v382 = vld [vmem:[%s139 + $0x6b8] sm:$0xff]
        %v383 = vld [vmem:[%s139 + $0x6c0] sm:$0xff]
        %v384 = vld [vmem:[%s139 + $0x6c8] sm:$0xff]
        %v385 = vld [vmem:[%s139 + $0x6d0] sm:$0xff]
        %v386 = vld [vmem:[%s139 + $0x6d8] sm:$0xff]
        %v387 = vld [vmem:[%s139 + $0x6e0] sm:$0xff]
        %v388 = vld [vmem:[%s139 + $0x6e8] sm:$0xff]
        %v389 = vld [vmem:[%s139 + $0x6f0] sm:$0xff]
        %v390 = vld [vmem:[%s139 + $0x6f8] sm:$0xff]
        %v391 = vld [vmem:[%s139 + $0x700] sm:$0xff]
        %v392 = vld [vmem:[%s139 + $0x708] sm:$0xff]
        %v393 = vld [vmem:[%s139 + $0x710] sm:$0xff]
        %v394 = vld [vmem:[%s139 + $0x718] sm:$0xff]
        %v395 = vld [vmem:[%s139 + $0x720] sm:$0xff]
        %v396 = vld [vmem:[%s139 + $0x728] sm:$0xff]
        %v397 = vld [vmem:[%s139 + $0x730] sm:$0xff]
        %v398 = vld [vmem:[%s139 + $0x738] sm:$0xff]
        %v399 = vld [vmem:[%s139 + $0x740] sm:$0xff]
        %v400 = vld [vmem:[%s139 + $0x748] sm:$0xff]
        %v401 = vld [vmem:[%s139 + $0x750] sm:$0xff]
        %v402 = vld [vmem:[%s139 + $0x758] sm:$0xff]
        %v403 = vld [vmem:[%s139 + $0x760] sm:$0xff]
        %v404 = vld [vmem:[%s139 + $0x768] sm:$0xff]
        %v405 = vld [vmem:[%s139 + $0x770] sm:$0xff]
        %v406 = vld [vmem:[%s139 + $0x778] sm:$0xff]
        %v407 = vld [vmem:[%s139 + $0x780] sm:$0xff]
        %v408 = vld [vmem:[%s139 + $0x788] sm:$0xff]
        %v409 = vld [vmem:[%s139 + $0x790] sm:$0xff]
        %v410 = vld [vmem:[%s139 + $0x798] sm:$0xff]
        %v411 = vld [vmem:[%s139 + $0x7a0] sm:$0xff]
        %v412 = vld [vmem:[%s139 + $0x7a8] sm:$0xff]
        %v413 = vld [vmem:[%s139 + $0x7b0] sm:$0xff]
        %v414 = vld [vmem:[%s139 + $0x7b8] sm:$0xff]
        %v415 = vld [vmem:[%s139 + $0x7c0] sm:$0xff]
        %v416 = vld [vmem:[%s139 + $0x7c8] sm:$0xff]
        %v417 = vld [vmem:[%s139 + $0x7d0] sm:$0xff]
        %v418 = vld [vmem:[%s139 + $0x7d8] sm:$0xff]
        %v419 = vld [vmem:[%s139 + $0x7e0] sm:$0xff]
        %v420 = vld [vmem:[%s139 + $0x7e8] sm:$0xff]
        %v421 = vld [vmem:[%s139 + $0x7f0] sm:$0xff]
        %v422 = vld [vmem:[%s139 + $0x7f8] sm:$0xff]
        %v423 = vld [vmem:[%s139 + $0x800] sm:$0xff]
        %v424 = vld [vmem:[%s139 + $0x808] sm:$0xff]
        %v425 = vld [vmem:[%s139 + $0x810] sm:$0xff]
        %v426 = vld [vmem:[%s139 + $0x818] sm:$0xff]
        %v427 = vld [vmem:[%s139 + $0x820] sm:$0xff]
        %v428 = vld [vmem:[%s139 + $0x828] sm:$0xff]
        %v429 = vld [vmem:[%s139 + $0x830] sm:$0xff]
        %v430 = vld [vmem:[%s139 + $0x838] sm:$0xff]
        %v431 = vld [vmem:[%s139 + $0x840] sm:$0xff]
        %v432 = vld [vmem:[%s139 + $0x848] sm:$0xff]
        %v433 = vld [vmem:[%s139 + $0x850] sm:$0xff]
        %v434 = vld [vmem:[%s139 + $0x858] sm:$0xff]
        %v435 = vld [vmem:[%s139 + $0x860] sm:$0xff]
        %v436 = vld [vmem:[%s139 + $0x868] sm:$0xff]
        %v437 = vld [vmem:[%s139 + $0x870] sm:$0xff]
        %v438 = vld [vmem:[%s139 + $0x878] sm:$0xff]
        %v439 = vld [vmem:[%s139 + $0x880] sm:$0xff]
        %v440 = vld [vmem:[%s139 + $0x888] sm:$0xff]
        %v441 = vld [vmem:[%s139 + $0x890] sm:$0xff]
        %v442 = vld [vmem:[%s139 + $0x898] sm:$0xff]
        %v443 = vld [vmem:[%s139 + $0x8a0] sm:$0xff]
        %v444 = vld [vmem:[%s139 + $0x8a8] sm:$0xff]
        %v445 = vld [vmem:[%s139 + $0x8b0] sm:$0xff]
        %v446 = vld [vmem:[%s139 + $0x8b8] sm:$0xff]
        %v447 = vld [vmem:[%s139 + $0x8c0] sm:$0xff]
        %v448 = vld [vmem:[%s139 + $0x8c8] sm:$0xff]
        %v449 = vld [vmem:[%s139 + $0x8d0] sm:$0xff]
        %v450 = vld [vmem:[%s139 + $0x8d8] sm:$0xff]
        %v451 = vld [vmem:[%s139 + $0x8e0] sm:$0xff]
        %v452 = vld [vmem:[%s139 + $0x8e8] sm:$0xff]
        %v453 = vld [vmem:[%s139 + $0x8f0] sm:$0xff]
        %v454 = vld [vmem:[%s139 + $0x8f8] sm:$0xff]
        %v455 = vld [vmem:[%s139 + $0x900] sm:$0xff]
        %v456 = vld [vmem:[%s139 + $0x908] sm:$0xff]
        %v457 = vld [vmem:[%s139 + $0x910] sm:$0xff]
        %v458 = vld [vmem:[%s139 + $0x918] sm:$0xff]
        %v459 = vld [vmem:[%s139 + $0x920] sm:$0xff]
        %v460 = vld [vmem:[%s139 + $0x928] sm:$0xff]
        %v461 = vld [vmem:[%s139 + $0x930] sm:$0xff]
        %v462 = vld [vmem:[%s139 + $0x938] sm:$0xff]
        %v463 = vld [vmem:[%s139 + $0x940] sm:$0xff]
        %v464 = vld [vmem:[%s139 + $0x948] sm:$0xff]
        %v465 = vld [vmem:[%s139 + $0x950] sm:$0xff]
        %v466 = vld [vmem:[%s139 + $0x958] sm:$0xff]
        %v467 = vld [vmem:[%s139 + $0x960] sm:$0xff]
        %v468 = vld [vmem:[%s139 + $0x968] sm:$0xff]
        %v469 = vld [vmem:[%s139 + $0x970] sm:$0xff]
        %v470 = vld [vmem:[%s139 + $0x978] sm:$0xff]
        %v471 = vld [vmem:[%s139 + $0x980] sm:$0xff]
        %v472 = vld [vmem:[%s139 + $0x988] sm:$0xff]
        %v473 = vld [vmem:[%s139 + $0x990] sm:$0xff]
        %v474 = vld [vmem:[%s139 + $0x998] sm:$0xff]
        %v475 = vld [vmem:[%s139 + $0x9a0] sm:$0xff]
        %v476 = vld [vmem:[%s139 + $0x9a8] sm:$0xff]
        %v477 = vld [vmem:[%s139 + $0x9b0] sm:$0xff]
        %v478 = vld [vmem:[%s139 + $0x9b8] sm:$0xff]
        %v479 = vld [vmem:[%s139 + $0x9c0] sm:$0xff]
        %v480 = vld [vmem:[%s139 + $0x9c8] sm:$0xff]
        %v481 = vld [vmem:[%s139 + $0x9d0] sm:$0xff]
        %v482 = vld [vmem:[%s139 + $0x9d8] sm:$0xff]
        %v483 = vld [vmem:[%s139 + $0x9e0] sm:$0xff]
        %v484 = vld [vmem:[%s139 + $0x9e8] sm:$0xff]
        %v485 = vld [vmem:[%s139 + $0x9f0] sm:$0xff]
        %v486 = vld [vmem:[%s139 + $0x9f8] sm:$0xff]
        %v487 = vld [vmem:[%s139 + $0xa00] sm:$0xff]
        %v488 = vld [vmem:[%s139 + $0xa08] sm:$0xff]
        %v489 = vld [vmem:[%s139 + $0xa10] sm:$0xff]
        %v490 = vld [vmem:[%s139 + $0xa18] sm:$0xff]
        %v491 = vld [vmem:[%s139 + $0xa20] sm:$0xff]
        %v492 = vld [vmem:[%s139 + $0xa28] sm:$0xff]
        %v493 = vld [vmem:[%s139 + $0xa30] sm:$0xff]
        %v494 = vld [vmem:[%s139 + $0xa38] sm:$0xff]
        %v495 = vld [vmem:[%s139 + $0xa40] sm:$0xff]
        %v496 = vld [vmem:[%s139 + $0xa48] sm:$0xff]
        %v497 = vld [vmem:[%s139 + $0xa50] sm:$0xff]
        %v498 = vld [vmem:[%s139 + $0xa58] sm:$0xff]
        %v499 = vld [vmem:[%s139 + $0xa60] sm:$0xff]
        %v500 = vld [vmem:[%s139 + $0xa68] sm:$0xff]
        %v501 = vld [vmem:[%s139 + $0xa70] sm:$0xff]
        %v502 = vld [vmem:[%s139 + $0xa78] sm:$0xff]
        %v503 = vld [vmem:[%s139 + $0xa80] sm:$0xff]
        %v504 = vld [vmem:[%s139 + $0xa88] sm:$0xff]
        %v505 = vld [vmem:[%s139 + $0xa90] sm:$0xff]
        %v506 = vld [vmem:[%s139 + $0xa98] sm:$0xff]
        %v507 = vld [vmem:[%s139 + $0xaa0] sm:$0xff]
        %v508 = vld [vmem:[%s139 + $0xaa8] sm:$0xff]
        %v509 = vld [vmem:[%s139 + $0xab0] sm:$0xff]
        %v510 = vld [vmem:[%s139 + $0xab8] sm:$0xff]
        %v511 = vld [vmem:[%s139 + $0xac0] sm:$0xff]
        %v512 = vld [vmem:[%s139 + $0xac8] sm:$0xff]
        %v513 = vld [vmem:[%s139 + $0xad0] sm:$0xff]
        %v514 = vld [vmem:[%s139 + $0xad8] sm:$0xff]
        %v515 = vld [vmem:[%s139 + $0xae0] sm:$0xff]
        %v516 = vld [vmem:[%s139 + $0xae8] sm:$0xff]
        %v517 = vld [vmem:[%s139 + $0xaf0] sm:$0xff]
        %v518 = vld [vmem:[%s139 + $0xaf8] sm:$0xff]
        %v519 = vld [vmem:[%s139 + $0xb00] sm:$0xff]
        %v520 = vld [vmem:[%s139 + $0xb08] sm:$0xff]
        %v521 = vld [vmem:[%s139 + $0xb10] sm:$0xff]
        %v522 = vld [vmem:[%s139 + $0xb18] sm:$0xff]
        %v523 = vld [vmem:[%s139 + $0xb20] sm:$0xff]
        %v524 = vld [vmem:[%s139 + $0xb28] sm:$0xff]
        %v525 = vld [vmem:[%s139 + $0xb30] sm:$0xff]
        %v526 = vld [vmem:[%s139 + $0xb38] sm:$0xff]
        %v527 = vld [vmem:[%s139 + $0xb40] sm:$0xff]
        %v528 = vld [vmem:[%s139 + $0xb48] sm:$0xff]
        %v529 = vld [vmem:[%s139 + $0xb50] sm:$0xff]
        %v530 = vld [vmem:[%s139 + $0xb58] sm:$0xff]
        %v531 = vld [vmem:[%s139 + $0xb60] sm:$0xff]
        %v532 = vld [vmem:[%s139 + $0xb68] sm:$0xff]
        %v533 = vld [vmem:[%s139 + $0xb70] sm:$0xff]
        %v534 = vld [vmem:[%s139 + $0xb78] sm:$0xff]
        %v535 = vld [vmem:[%s139 + $0xb80] sm:$0xff]
        %v536 = vld [vmem:[%s139 + $0xb88] sm:$0xff]
        %v537 = vld [vmem:[%s139 + $0xb90] sm:$0xff]
        %v538 = vld [vmem:[%s139 + $0xb98] sm:$0xff]
        %v539 = vld [vmem:[%s139 + $0xba0] sm:$0xff]
        %v540 = vld [vmem:[%s139 + $0xba8] sm:$0xff]
        %v541 = vld [vmem:[%s139 + $0xbb0] sm:$0xff]
        %v542 = vld [vmem:[%s139 + $0xbb8] sm:$0xff]
        %v543 = vld [vmem:[%s139 + $0xbc0] sm:$0xff]
        %v544 = vld [vmem:[%s139 + $0xbc8] sm:$0xff]
        %v545 = vld [vmem:[%s139 + $0xbd0] sm:$0xff]
        %v546 = vld [vmem:[%s139 + $0xbd8] sm:$0xff]
        %v547 = vld [vmem:[%s139 + $0xbe0] sm:$0xff]
        %v548 = vld [vmem:[%s139 + $0xbe8] sm:$0xff]
        %v549 = vld [vmem:[%s139 + $0xbf0] sm:$0xff]
        %v550 = vld [vmem:[%s139 + $0xbf8] sm:$0xff]
        %v551 = vld [vmem:[%s139 + $0xc00] sm:$0xff]
        %v552 = vld [vmem:[%s139 + $0xc08] sm:$0xff]
        %v553 = vld [vmem:[%s139 + $0xc10] sm:$0xff]
        %v554 = vld [vmem:[%s139 + $0xc18] sm:$0xff]
        %v555 = vld [vmem:[%s139 + $0xc20] sm:$0xff]
        %v556 = vld [vmem:[%s139 + $0xc28] sm:$0xff]
        %v557 = vld [vmem:[%s139 + $0xc30] sm:$0xff]
        %v558 = vld [vmem:[%s139 + $0xc38] sm:$0xff]
        %v559 = vld [vmem:[%s139 + $0xc40] sm:$0xff]
        %v560 = vld [vmem:[%s139 + $0xc48] sm:$0xff]
        %v561 = vld [vmem:[%s139 + $0xc50] sm:$0xff]
        %v562 = vld [vmem:[%s139 + $0xc58] sm:$0xff]
        %v563 = vld [vmem:[%s139 + $0xc60] sm:$0xff]
        %v564 = vld [vmem:[%s139 + $0xc68] sm:$0xff]
        %v565 = vld [vmem:[%s139 + $0xc70] sm:$0xff]
        %v566 = vld [vmem:[%s139 + $0xc78] sm:$0xff]
        %v567 = vld [vmem:[%s139 + $0xc80] sm:$0xff]
        %v568 = vld [vmem:[%s139 + $0xc88] sm:$0xff]
        %v569 = vld [vmem:[%s139 + $0xc90] sm:$0xff]
        %v570 = vld [vmem:[%s139 + $0xc98] sm:$0xff]
        %v571 = vld [vmem:[%s139 + $0xca0] sm:$0xff]
        %v572 = vld [vmem:[%s139 + $0xca8] sm:$0xff]
        %v573 = vld [vmem:[%s139 + $0xcb0] sm:$0xff]
        %v574 = vld [vmem:[%s139 + $0xcb8] sm:$0xff]
        %v575 = vld [vmem:[%s139 + $0xcc0] sm:$0xff]
        %v576 = vld [vmem:[%s139 + $0xcc8] sm:$0xff]
        %v577 = vld [vmem:[%s139 + $0xcd0] sm:$0xff]
        %v578 = vld [vmem:[%s139 + $0xcd8] sm:$0xff]
        %v579 = vld [vmem:[%s139 + $0xce0] sm:$0xff]
        %v580 = vld [vmem:[%s139 + $0xce8] sm:$0xff]
        %v581 = vld [vmem:[%s139 + $0xcf0] sm:$0xff]
        %v582 = vld [vmem:[%s139 + $0xcf8] sm:$0xff]
        %v583 = vld [vmem:[%s139 + $0xd00] sm:$0xff]
        %v584 = vld [vmem:[%s139 + $0xd08] sm:$0xff]
        %v585 = vld [vmem:[%s139 + $0xd10] sm:$0xff]
        %v586 = vld [vmem:[%s139 + $0xd18] sm:$0xff]
        %v587 = vld [vmem:[%s139 + $0xd20] sm:$0xff]
        %v588 = vld [vmem:[%s139 + $0xd28] sm:$0xff]
        %v589 = vld [vmem:[%s139 + $0xd30] sm:$0xff]
        %v590 = vld [vmem:[%s139 + $0xd38] sm:$0xff]
        %v591 = vld [vmem:[%s139 + $0xd40] sm:$0xff]
        %v592 = vld [vmem:[%s139 + $0xd48] sm:$0xff]
        %v593 = vld [vmem:[%s139 + $0xd50] sm:$0xff]
        %v594 = vld [vmem:[%s139 + $0xd58] sm:$0xff]
        %v595 = vld [vmem:[%s139 + $0xd60] sm:$0xff]
        %v596 = vld [vmem:[%s139 + $0xd68] sm:$0xff]
        %v597 = vld [vmem:[%s139 + $0xd70] sm:$0xff]
        %v598 = vld [vmem:[%s139 + $0xd78] sm:$0xff]
        %v599 = vld [vmem:[%s1] sm:$0xff]
        %v600 = vld [vmem:[%s1 + $0x8] sm:$0xff]
        %v601 = vld [vmem:[%s1 + $0x10] sm:$0xff]
        %v602 = vld [vmem:[%s1 + $0x18] sm:$0xff]
        %v603 = vld [vmem:[%s1 + $0x20] sm:$0xff]
        %v604 = vld [vmem:[%s1 + $0x28] sm:$0xff]
        %v605 = vld [vmem:[%s1 + $0x30] sm:$0xff]
        %v606 = vld [vmem:[%s1 + $0x38] sm:$0xff]
        %v607 = vld [vmem:[%s1 + $0x40] sm:$0xff]
        %v608 = vld [vmem:[%s1 + $0x48] sm:$0xff]
        %v609 = vld [vmem:[%s1 + $0x50] sm:$0xff]
        %v610 = vld [vmem:[%s1 + $0x58] sm:$0xff]
        %v611 = vld [vmem:[%s1 + $0x60] sm:$0xff]
        %v612 = vld [vmem:[%s1 + $0x68] sm:$0xff]
        %v613 = vld [vmem:[%s1 + $0x70] sm:$0xff]
        %v614 = vld [vmem:[%s1 + $0x78] sm:$0xff]
        %v615 = vld [vmem:[%s1 + $0x80] sm:$0xff]
        %v616 = vld [vmem:[%s1 + $0x88] sm:$0xff]
        %v617 = vld [vmem:[%s1 + $0x90] sm:$0xff]
        %v618 = vld [vmem:[%s1 + $0x98] sm:$0xff]
        %v619 = vld [vmem:[%s1 + $0xa0] sm:$0xff]
        %v620 = vld [vmem:[%s1 + $0xa8] sm:$0xff]
        %v621 = vld [vmem:[%s1 + $0xb0] sm:$0xff]
        %v622 = vld [vmem:[%s1 + $0xb8] sm:$0xff]
        %v623 = vld [vmem:[%s1 + $0xc0] sm:$0xff]
        %v624 = vld [vmem:[%s1 + $0xc8] sm:$0xff]
        %v625 = vld [vmem:[%s1 + $0xd0] sm:$0xff]
        %v626 = vld [vmem:[%s1 + $0xd8] sm:$0xff]
        %v627 = vld [vmem:[%s1 + $0xe0] sm:$0xff]
        %v628 = vld [vmem:[%s1 + $0xe8] sm:$0xff]
        %v629 = vld [vmem:[%s1 + $0xf0] sm:$0xff]
        %v630 = vld [vmem:[%s1 + $0xf8] sm:$0xff]
        %v631 = vld [vmem:[%s1 + $0x100] sm:$0xff]
        %v632 = vld [vmem:[%s1 + $0x108] sm:$0xff]
        %v633 = vld [vmem:[%s1 + $0x110] sm:$0xff]
        %v634 = vld [vmem:[%s1 + $0x118] sm:$0xff]
        %v635 = vld [vmem:[%s1 + $0x120] sm:$0xff]
        %v636 = vld [vmem:[%s1 + $0x128] sm:$0xff]
        %v637 = vld [vmem:[%s1 + $0x130] sm:$0xff]
        %v638 = vld [vmem:[%s1 + $0x138] sm:$0xff]
        %v639 = vld [vmem:[%s1 + $0x140] sm:$0xff]
        %v640 = vld [vmem:[%s1 + $0x148] sm:$0xff]
        %v641 = vld [vmem:[%s1 + $0x150] sm:$0xff]
        %v642 = vld [vmem:[%s1 + $0x158] sm:$0xff]
        %v643 = vld [vmem:[%s1 + $0x160] sm:$0xff]
        %v644 = vld [vmem:[%s1 + $0x168] sm:$0xff]
        %v645 = vld [vmem:[%s1 + $0x170] sm:$0xff]
        %v646 = vld [vmem:[%s1 + $0x178] sm:$0xff]
        %647 = vmatprep.subr.mxu0 0.0
        %648 = vmatpush1.msra.mxu0 %v599
        %649 = vmatprep.subr.mxu0 0.0
        %650 = vmatpush1.msra.mxu0 %v600
        %651 = vmatprep.subr.mxu0 0.0
        %652 = vmatpush1.msra.mxu0 %v601
        %653 = vmatprep.subr.mxu0 0.0
        %654 = vmatpush1.msra.mxu0 %v602
        %655 = vmatprep.subr.mxu0 0.0
        %656 = vmatpush1.msra.mxu0 %v603
        %657 = vmatprep.subr.mxu0 0.0
        %658 = vmatpush1.msra.mxu0 %v604
        %659 = vmatprep.subr.mxu0 0.0
        %660 = vmatpush1.msra.mxu0 %v605
        %661 = vmatprep.subr.mxu0 0.0
        %662 = vmatpush1.msra.mxu0 %v606
        %663 = vmatprep.subr.mxu0 0.0
        %664 = vmatpush1.msra.mxu0 %v607
        %665 = vmatprep.subr.mxu0 0.0
        %666 = vmatpush1.msra.mxu0 %v608
        %667 = vmatprep.subr.mxu0 0.0
        %668 = vmatpush1.msra.mxu0 %v609
        %669 = vmatprep.subr.mxu0 0.0
        %670 = vmatpush1.msra.mxu0 %v610
        %671 = vmatprep.subr.mxu0 0.0
        %672 = vmatpush1.msra.mxu0 %v611
        %673 = vmatprep.subr.mxu0 0.0
        %674 = vmatpush1.msra.mxu0 %v612
        %675 = vmatprep.subr.mxu0 0.0
        %676 = vmatpush1.msra.mxu0 %v613
        %677 = vmatprep.subr.mxu0 0.0
        %678 = vmatpush1.msra.mxu0 %v614
        %679 = vmatprep.subr.mxu0 0.0
        %680 = vmatpush1.msra.mxu0 %v615
        %681 = vmatprep.subr.mxu0 0.0
        %682 = vmatpush1.msra.mxu0 %v616
        %683 = vmatprep.subr.mxu0 0.0
        %684 = vmatpush1.msra.mxu0 %v617
        %685 = vmatprep.subr.mxu0 0.0
        %686 = vmatpush1.msra.mxu0 %v618
        %687 = vmatprep.subr.mxu0 0.0
        %688 = vmatpush1.msra.mxu0 %v619
        %689 = vmatprep.subr.mxu0 0.0
        %690 = vmatpush1.msra.mxu0 %v620
        %691 = vmatprep.subr.mxu0 0.0
        %692 = vmatpush1.msra.mxu0 %v621
        %693 = vmatprep.subr.mxu0 0.0
        %694 = vmatpush1.msra.mxu0 %v622
        %695 = vmatprep.subr.mxu0 0.0
        %696 = vmatpush1.msra.mxu0 %v623
        %697 = vmatprep.subr.mxu0 0.0
        %698 = vmatpush1.msra.mxu0 %v624
        %699 = vmatprep.subr.mxu0 0.0
        %700 = vmatpush1.msra.mxu0 %v625
        %701 = vmatprep.subr.mxu0 0.0
        %702 = vmatpush1.msra.mxu0 %v626
        %703 = vmatprep.subr.mxu0 0.0
        %704 = vmatpush1.msra.mxu0 %v627
        %705 = vmatprep.subr.mxu0 0.0
        %706 = vmatpush1.msra.mxu0 %v628
        %707 = vmatprep.subr.mxu0 0.0
        %708 = vmatpush1.msra.mxu0 %v629
        %709 = vmatprep.subr.mxu0 0.0
        %710 = vmatpush1.msra.mxu0 %v630
        %711 = vmatprep.mubr.f32.mxu0 %v168
        %712 = vmatmul.mubr.f32.gmra.mrb[0].mxu0 %v167
        %v713 = vpop.f32.mrb[0].mxu0
        %v714 = vadd.f32 0.0, %v713
        %v715 = vpop.f32.mrb[0].mxu0
        %716 = vmatprep.mubr.f32.mxu0 %v171
        %717 = vmatmul.mubr.f32.gmra.mrb[0].mxu0 %v170
        %v718 = vpop.f32.mrb[0].mxu0
        %v719 = vadd.f32 0.0, %v718
        %v720 = vpop.f32.mrb[0].mxu0
        %721 = vmatprep.mubr.f32.mxu0 %v174
        %722 = vmatmul.mubr.f32.gmra.mrb[0].mxu0 %v173
        %v723 = vpop.f32.mrb[0].mxu0
        %v724 = vadd.f32 0.0, %v723
        %v725 = vpop.f32.mrb[0].mxu0
        %726 = vmatprep.mubr.f32.mxu0 %v177
        %727 = vmatmul.mubr.f32.gmra.mrb[0].mxu0 %v176
        %v728 = vpop.f32.mrb[0].mxu0
        %v729 = vadd.f32 0.0, %v728
        %v730 = vpop.f32.mrb[0].mxu0
        %731 = vmatprep.mubr.f32.mxu0 %v180
        %732 = vmatmul.mubr.f32.gmra.mrb[0].mxu0 %v179
        %v733 = vpop.f32.mrb[0].mxu0
        %v734 = vadd.f32 0.0, %v733
        %v735 = vpop.f32.mrb[0].mxu0
        %736 = vmatprep.mubr.f32.mxu0 %v183
        %737 = vmatmul.mubr.f32.gmra.mrb[0].mxu0 %v182
        %v738 = vpop.f32.mrb[0].mxu0
        %v739 = vadd.f32 0.0, %v738
        %v740 = vpop.f32.mrb[0].mxu0
        %741 = vmatprep.mubr.f32.mxu0 %v186
        %742 = vmatmul.mubr.f32.gmra.mrb[0].mxu0 %v185
        %v743 = vpop.f32.mrb[0].mxu0
        %v744 = vadd.f32 0.0, %v743
        %v745 = vpop.f32.mrb[0].mxu0
        %746 = vmatprep.mubr.f32.mxu0 %v189
        %747 = vmatmul.mubr.f32.gmra.mrb[0].mxu0 %v188
        %v748 = vpop.f32.mrb[0].mxu0
        %v749 = vadd.f32 0.0, %v748
        %v750 = vpop.f32.mrb[0].mxu0
        %751 = vmatprep.mubr.f32.mxu0 %v192
        %752 = vmatmul.mubr.f32.gmra.mrb[0].mxu0 %v191
        %v753 = vpop.f32.mrb[0].mxu0
        %v754 = vadd.f32 0.0, %v753
        %v755 = vpop.f32.mrb[0].mxu0
        %756 = vmatprep.mubr.f32.mxu0 %v195
        %757 = vmatmul.mubr.f32.gmra.mrb[0].mxu0 %v194
        %v758 = vpop.f32.mrb[0].mxu0
        %v759 = vadd.f32 0.0, %v758
        %v760 = vpop.f32.mrb[0].mxu0
        %761 = vmatprep.mubr.f32.mxu0 %v198
        %762 = vmatmul.mubr.f32.gmra.mrb[0].mxu0 %v197
        %v763 = vpop.f32.mrb[0].mxu0
        %v764 = vadd.f32 0.0, %v763
        %v765 = vpop.f32.mrb[0].mxu0
        %766 = vmatprep.mubr.f32.mxu0 %v201
        %767 = vmatmul.mubr.f32.gmra.mrb[0].mxu0 %v200
        %v768 = vpop.f32.mrb[0].mxu0
        %v769 = vadd.f32 0.0, %v768
        %v770 = vpop.f32.mrb[0].mxu0
        %771 = vmatprep.mubr.f32.mxu0 %v204
        %772 = vmatmul.mubr.f32.gmra.mrb[0].mxu0 %v203
        %v773 = vpop.f32.mrb[0].mxu0
        %v774 = vadd.f32 0.0, %v773
        %v775 = vpop.f32.mrb[0].mxu0
        %776 = vmatprep.mubr.f32.mxu0 %v207
        %777 = vmatmul.mubr.f32.gmra.mrb[0].mxu0 %v206
        %v778 = vpop.f32.mrb[0].mxu0
        %v779 = vadd.f32 0.0, %v778
        %v780 = vpop.f32.mrb[0].mxu0
        %781 = vmatprep.mubr.f32.mxu0 %v210
        %782 = vmatmul.mubr.f32.gmra.mrb[0].mxu0 %v209
        %v783 = vpop.f32.mrb[0].mxu0
        %v784 = vadd.f32 0.0, %v783
        %v785 = vpop.f32.mrb[0].mxu0
        %786 = vmatprep.mubr.f32.mxu0 %v213
        %787 = vmatmul.mubr.f32.gmra.mrb[0].mxu0 %v212
        %v788 = vpop.f32.mrb[0].mxu0
        %v789 = vadd.f32 0.0, %v788
        %v790 = vpop.f32.mrb[0].mxu0
        %791 = vmatprep.mubr.f32.mxu0 %v216
        %792 = vmatmul.mubr.f32.gmra.mrb[0].mxu0 %v215
        %v793 = vpop.f32.mrb[0].mxu0
        %v794 = vadd.f32 0.0, %v793
        %v795 = vpop.f32.mrb[0].mxu0
        %796 = vmatprep.mubr.f32.mxu0 %v219
        %797 = vmatmul.mubr.f32.gmra.mrb[0].mxu0 %v218
        %v798 = vpop.f32.mrb[0].mxu0
        %v799 = vadd.f32 0.0, %v798
        %v800 = vpop.f32.mrb[0].mxu0
        %801 = vmatprep.mubr.f32.mxu0 %v222
        %802 = vmatmul.mubr.f32.gmra.mrb[0].mxu0 %v221
        %v803 = vpop.f32.mrb[0].mxu0
        %v804 = vadd.f32 0.0, %v803
        %v805 = vpop.f32.mrb[0].mxu0
        %806 = vmatprep.mubr.f32.mxu0 %v225
        %807 = vmatmul.mubr.f32.gmra.mrb[0].mxu0 %v224
        %v808 = vpop.f32.mrb[0].mxu0
        %v809 = vadd.f32 0.0, %v808
        %v810 = vpop.f32.mrb[0].mxu0
        %811 = vmatprep.mubr.f32.mxu0 %v228
        %812 = vmatmul.mubr.f32.gmra.mrb[0].mxu0 %v227
        %v813 = vpop.f32.mrb[0].mxu0
        %v814 = vadd.f32 0.0, %v813
        %v815 = vpop.f32.mrb[0].mxu0
        %816 = vmatprep.mubr.f32.mxu0 %v231
        %817 = vmatmul.mubr.f32.gmra.mrb[0].mxu0 %v230
        %v818 = vpop.f32.mrb[0].mxu0
        %v819 = vadd.f32 0.0, %v818
        %v820 = vpop.f32.mrb[0].mxu0
        %821 = vmatprep.mubr.f32.mxu0 %v234
        %822 = vmatmul.mubr.f32.gmra.mrb[0].mxu0 %v233
        %v823 = vpop.f32.mrb[0].mxu0
        %v824 = vadd.f32 0.0, %v823
        %v825 = vpop.f32.mrb[0].mxu0
        %826 = vmatprep.mubr.f32.mxu0 %v237
        %827 = vmatmul.mubr.f32.gmra.mrb[0].mxu0 %v236
        %v828 = vpop.f32.mrb[0].mxu0
        %v829 = vadd.f32 0.0, %v828
        %v830 = vpop.f32.mrb[0].mxu0
        %831 = vmatprep.mubr.f32.mxu0 %v240
        %832 = vmatmul.mubr.f32.gmra.mrb[0].mxu0 %v239
        %v833 = vpop.f32.mrb[0].mxu0
        %v834 = vadd.f32 0.0, %v833
        %v835 = vpop.f32.mrb[0].mxu0
        %836 = vmatprep.mubr.f32.mxu0 %v243
        %837 = vmatmul.mubr.f32.gmra.mrb[0].mxu0 %v242
        %v838 = vpop.f32.mrb[0].mxu0
        %v839 = vadd.f32 0.0, %v838
        %v840 = vpop.f32.mrb[0].mxu0
        %841 = vmatprep.mubr.f32.mxu0 %v246
        %842 = vmatmul.mubr.f32.gmra.mrb[0].mxu0 %v245
        %v843 = vpop.f32.mrb[0].mxu0
        %v844 = vadd.f32 0.0, %v843
        %v845 = vpop.f32.mrb[0].mxu0
        %846 = vmatprep.mubr.f32.mxu0 %v249
        %847 = vmatmul.mubr.f32.gmra.mrb[0].mxu0 %v248
        %v848 = vpop.f32.mrb[0].mxu0
        %v849 = vadd.f32 0.0, %v848
        %v850 = vpop.f32.mrb[0].mxu0
        %851 = vmatprep.mubr.f32.mxu0 %v252
        %852 = vmatmul.mubr.f32.gmra.mrb[0].mxu0 %v251
        %v853 = vpop.f32.mrb[0].mxu0
        %v854 = vadd.f32 0.0, %v853
        %v855 = vpop.f32.mrb[0].mxu0
        %856 = vmatprep.mubr.f32.mxu0 %v255
        %857 = vmatmul.mubr.f32.gmra.mrb[0].mxu0 %v254
        %v858 = vpop.f32.mrb[0].mxu0
        %v859 = vadd.f32 0.0, %v858
        %v860 = vpop.f32.mrb[0].mxu0
        %861 = vmatprep.mubr.f32.mxu0 %v258
        %862 = vmatmul.mubr.f32.gmra.mrb[0].mxu0 %v257
        %v863 = vpop.f32.mrb[0].mxu0
        %v864 = vadd.f32 0.0, %v863
        %v865 = vpop.f32.mrb[0].mxu0
        %866 = vmatprep.mubr.f32.mxu0 %v261
        %867 = vmatmul.mubr.f32.gmra.mrb[0].mxu0 %v260
        %v868 = vpop.f32.mrb[0].mxu0
        %v869 = vadd.f32 0.0, %v868
        %v870 = vpop.f32.mrb[0].mxu0
        %871 = vmatprep.mubr.f32.mxu0 %v264
        %872 = vmatmul.mubr.f32.gmra.mrb[0].mxu0 %v263
        %v873 = vpop.f32.mrb[0].mxu0
        %v874 = vadd.f32 0.0, %v873
        %v875 = vpop.f32.mrb[0].mxu0
        %876 = vmatprep.mubr.f32.mxu0 %v267
        %877 = vmatmul.mubr.f32.gmra.mrb[0].mxu0 %v266
        %v878 = vpop.f32.mrb[0].mxu0
        %v879 = vadd.f32 0.0, %v878
        %v880 = vpop.f32.mrb[0].mxu0
        %881 = vmatprep.mubr.f32.mxu0 %v270
        %882 = vmatmul.mubr.f32.gmra.mrb[0].mxu0 %v269
        %v883 = vpop.f32.mrb[0].mxu0
        %v884 = vadd.f32 0.0, %v883
        %v885 = vpop.f32.mrb[0].mxu0
        %886 = vmatprep.mubr.f32.mxu0 %v273
        %887 = vmatmul.mubr.f32.gmra.mrb[0].mxu0 %v272
        %v888 = vpop.f32.mrb[0].mxu0
        %v889 = vadd.f32 0.0, %v888
        %v890 = vpop.f32.mrb[0].mxu0
        %891 = vmatprep.mubr.f32.mxu0 %v276
        %892 = vmatmul.mubr.f32.gmra.mrb[0].mxu0 %v275
        %v893 = vpop.f32.mrb[0].mxu0
        %v894 = vadd.f32 0.0, %v893
        %v895 = vpop.f32.mrb[0].mxu0
        %896 = vmatprep.mubr.f32.mxu0 %v279
        %897 = vmatmul.mubr.f32.gmra.mrb[0].mxu0 %v278
        %v898 = vpop.f32.mrb[0].mxu0
        %v899 = vadd.f32 0.0, %v898
        %v900 = vpop.f32.mrb[0].mxu0
        %901 = vmatprep.mubr.f32.mxu0 %v282
        %902 = vmatmul.mubr.f32.gmra.mrb[0].mxu0 %v281
        %v903 = vpop.f32.mrb[0].mxu0
        %v904 = vadd.f32 0.0, %v903
        %v905 = vpop.f32.mrb[0].mxu0
        %906 = vmatprep.mubr.f32.mxu0 %v285
        %907 = vmatmul.mubr.f32.gmra.mrb[0].mxu0 %v284
        %v908 = vpop.f32.mrb[0].mxu0
        %v909 = vadd.f32 0.0, %v908
        %v910 = vpop.f32.mrb[0].mxu0
        %911 = vmatprep.mubr.f32.mxu0 %v288
        %912 = vmatmul.mubr.f32.gmra.mrb[0].mxu0 %v287
        %v913 = vpop.f32.mrb[0].mxu0
        %v914 = vadd.f32 0.0, %v913
        %v915 = vpop.f32.mrb[0].mxu0
        %916 = vmatprep.mubr.f32.mxu0 %v291
        %917 = vmatmul.mubr.f32.gmra.mrb[0].mxu0 %v290
        %v918 = vpop.f32.mrb[0].mxu0
        %v919 = vadd.f32 0.0, %v918
        %v920 = vpop.f32.mrb[0].mxu0
        %921 = vmatprep.mubr.f32.mxu0 %v294
        %922 = vmatmul.mubr.f32.gmra.mrb[0].mxu0 %v293
        %v923 = vpop.f32.mrb[0].mxu0
        %v924 = vadd.f32 0.0, %v923
        %v925 = vpop.f32.mrb[0].mxu0
        %926 = vmatprep.mubr.f32.mxu0 %v297
        %927 = vmatmul.mubr.f32.gmra.mrb[0].mxu0 %v296
        %v928 = vpop.f32.mrb[0].mxu0
        %v929 = vadd.f32 0.0, %v928
        %v930 = vpop.f32.mrb[0].mxu0
        %931 = vmatprep.mubr.f32.mxu0 %v300
        %932 = vmatmul.mubr.f32.gmra.mrb[0].mxu0 %v299
        %v933 = vpop.f32.mrb[0].mxu0
        %v934 = vadd.f32 0.0, %v933
        %v935 = vpop.f32.mrb[0].mxu0
        %936 = vmatprep.mubr.f32.mxu0 %v303
        %937 = vmatmul.mubr.f32.gmra.mrb[0].mxu0 %v302
        %v938 = vpop.f32.mrb[0].mxu0
        %v939 = vadd.f32 0.0, %v938
        %v940 = vpop.f32.mrb[0].mxu0
        %941 = vmatprep.mubr.f32.mxu0 %v306
        %942 = vmatmul.mubr.f32.gmra.mrb[0].mxu0 %v305
        %v943 = vpop.f32.mrb[0].mxu0
        %v944 = vadd.f32 0.0, %v943
        %v945 = vpop.f32.mrb[0].mxu0
        %946 = vmatprep.mubr.f32.mxu0 %v309
        %947 = vmatmul.mubr.f32.gmra.mrb[0].mxu0 %v308
        %v948 = vpop.f32.mrb[0].mxu0
        %v949 = vadd.f32 0.0, %v948
        %v950 = vpop.f32.mrb[0].mxu0
        %951 = vmatprep.mubr.f32.mxu0 %v312
        %952 = vmatmul.mubr.f32.gmra.mrb[0].mxu0 %v311
        %v953 = vpop.f32.mrb[0].mxu0
        %v954 = vadd.f32 0.0, %v953
        %v955 = vpop.f32.mrb[0].mxu0
        %956 = vmatprep.mubr.f32.mxu0 %v315
        %957 = vmatmul.mubr.f32.gmra.mrb[0].mxu0 %v314
        %v958 = vpop.f32.mrb[0].mxu0
        %v959 = vadd.f32 0.0, %v958
        %v960 = vpop.f32.mrb[0].mxu0
        %961 = vmatprep.mubr.f32.mxu0 %v318
        %962 = vmatmul.mubr.f32.gmra.mrb[0].mxu0 %v317
        %v963 = vpop.f32.mrb[0].mxu0
        %v964 = vadd.f32 0.0, %v963
        %v965 = vpop.f32.mrb[0].mxu0
        %966 = vmatprep.mubr.f32.mxu0 %v321
        %967 = vmatmul.mubr.f32.gmra.mrb[0].mxu0 %v320
        %v968 = vpop.f32.mrb[0].mxu0
        %v969 = vadd.f32 0.0, %v968
        %v970 = vpop.f32.mrb[0].mxu0
        %971 = vmatprep.mubr.f32.mxu0 %v324
        %972 = vmatmul.mubr.f32.gmra.mrb[0].mxu0 %v323
        %v973 = vpop.f32.mrb[0].mxu0
        %v974 = vadd.f32 0.0, %v973
        %v975 = vpop.f32.mrb[0].mxu0
        %976 = vmatprep.mubr.f32.mxu0 %v327
        %977 = vmatmul.mubr.f32.gmra.mrb[0].mxu0 %v326
        %v978 = vpop.f32.mrb[0].mxu0
        %v979 = vadd.f32 0.0, %v978
        %v980 = vpop.f32.mrb[0].mxu0
        %981 = vmatprep.mubr.f32.mxu0 %v330
        %982 = vmatmul.mubr.f32.gmra.mrb[0].mxu0 %v329
        %v983 = vpop.f32.mrb[0].mxu0
        %v984 = vadd.f32 0.0, %v983
        %v985 = vpop.f32.mrb[0].mxu0
        %986 = vmatprep.mubr.f32.mxu0 %v333
        %987 = vmatmul.mubr.f32.gmra.mrb[0].mxu0 %v332
        %v988 = vpop.f32.mrb[0].mxu0
        %v989 = vadd.f32 0.0, %v988
        %v990 = vpop.f32.mrb[0].mxu0
        %991 = vmatprep.mubr.f32.mxu0 %v336
        %992 = vmatmul.mubr.f32.gmra.mrb[0].mxu0 %v335
        %v993 = vpop.f32.mrb[0].mxu0
        %v994 = vadd.f32 0.0, %v993
        %v995 = vpop.f32.mrb[0].mxu0
        %996 = vmatprep.mubr.f32.mxu0 %v339
        %997 = vmatmul.mubr.f32.gmra.mrb[0].mxu0 %v338
        %v998 = vpop.f32.mrb[0].mxu0
        %v999 = vadd.f32 0.0, %v998
        %v1000 = vpop.f32.mrb[0].mxu0
        %1001 = vmatprep.mubr.f32.mxu0 %v342
        %1002 = vmatmul.mubr.f32.gmra.mrb[0].mxu0 %v341
        %v1003 = vpop.f32.mrb[0].mxu0
        %v1004 = vadd.f32 0.0, %v1003
        %v1005 = vpop.f32.mrb[0].mxu0
        %1006 = vmatprep.mubr.f32.mxu0 %v345
        %1007 = vmatmul.mubr.f32.gmra.mrb[0].mxu0 %v344
        %v1008 = vpop.f32.mrb[0].mxu0
        %v1009 = vadd.f32 0.0, %v1008
        %v1010 = vpop.f32.mrb[0].mxu0
        %1011 = vmatprep.mubr.f32.mxu0 %v348
        %1012 = vmatmul.mubr.f32.gmra.mrb[0].mxu0 %v347
        %v1013 = vpop.f32.mrb[0].mxu0
        %v1014 = vadd.f32 0.0, %v1013
        %v1015 = vpop.f32.mrb[0].mxu0
        %1016 = vmatprep.mubr.f32.mxu0 %v351
        %1017 = vmatmul.mubr.f32.gmra.mrb[0].mxu0 %v350
        %v1018 = vpop.f32.mrb[0].mxu0
        %v1019 = vadd.f32 0.0, %v1018
        %v1020 = vpop.f32.mrb[0].mxu0
        %1021 = vmatprep.mubr.f32.mxu0 %v354
        %1022 = vmatmul.mubr.f32.gmra.mrb[0].mxu0 %v353
        %v1023 = vpop.f32.mrb[0].mxu0
        %v1024 = vadd.f32 0.0, %v1023
        %v1025 = vpop.f32.mrb[0].mxu0
        %1026 = vmatprep.mubr.f32.mxu0 %v357
        %1027 = vmatmul.mubr.f32.gmra.mrb[0].mxu0 %v356
        %v1028 = vpop.f32.mrb[0].mxu0
        %v1029 = vadd.f32 0.0, %v1028
        %v1030 = vpop.f32.mrb[0].mxu0
        %1031 = vmatprep.mubr.f32.mxu0 %v360
        %1032 = vmatmul.mubr.f32.gmra.mrb[0].mxu0 %v359
        %v1033 = vpop.f32.mrb[0].mxu0
        %v1034 = vadd.f32 0.0, %v1033
        %v1035 = vpop.f32.mrb[0].mxu0
        %1036 = vmatprep.mubr.f32.mxu0 %v363
        %1037 = vmatmul.mubr.f32.gmra.mrb[0].mxu0 %v362
        %v1038 = vpop.f32.mrb[0].mxu0
        %v1039 = vadd.f32 0.0, %v1038
        %v1040 = vpop.f32.mrb[0].mxu0
        %1041 = vmatprep.mubr.f32.mxu0 %v366
        %1042 = vmatmul.mubr.f32.gmra.mrb[0].mxu0 %v365
        %v1043 = vpop.f32.mrb[0].mxu0
        %v1044 = vadd.f32 0.0, %v1043
        %v1045 = vpop.f32.mrb[0].mxu0
        %1046 = vmatprep.mubr.f32.mxu0 %v369
        %1047 = vmatmul.mubr.f32.gmra.mrb[0].mxu0 %v368
        %v1048 = vpop.f32.mrb[0].mxu0
        %v1049 = vadd.f32 0.0, %v1048
        %v1050 = vpop.f32.mrb[0].mxu0
        %1051 = vmatprep.mubr.f32.mxu0 %v372
        %1052 = vmatmul.mubr.f32.gmra.mrb[0].mxu0 %v371
        %v1053 = vpop.f32.mrb[0].mxu0
        %v1054 = vadd.f32 0.0, %v1053
        %v1055 = vpop.f32.mrb[0].mxu0
        %1056 = vmatprep.mubr.f32.mxu0 %v375
        %1057 = vmatmul.mubr.f32.gmra.mrb[0].mxu0 %v374
        %v1058 = vpop.f32.mrb[0].mxu0
        %v1059 = vadd.f32 0.0, %v1058
        %v1060 = vpop.f32.mrb[0].mxu0
        %1061 = vmatprep.mubr.f32.mxu0 %v378
        %1062 = vmatmul.mubr.f32.gmra.mrb[0].mxu0 %v377
        %v1063 = vpop.f32.mrb[0].mxu0
        %v1064 = vadd.f32 0.0, %v1063
        %v1065 = vpop.f32.mrb[0].mxu0
        %1066 = vmatprep.mubr.f32.mxu0 %v381
        %1067 = vmatmul.mubr.f32.gmra.mrb[0].mxu0 %v380
        %v1068 = vpop.f32.mrb[0].mxu0
        %v1069 = vadd.f32 0.0, %v1068
        %v1070 = vpop.f32.mrb[0].mxu0
        %1071 = vmatprep.mubr.f32.mxu0 %v384
        %1072 = vmatmul.mubr.f32.gmra.mrb[0].mxu0 %v383
        %v1073 = vpop.f32.mrb[0].mxu0
        %v1074 = vadd.f32 0.0, %v1073
        %v1075 = vpop.f32.mrb[0].mxu0
        %1076 = vmatprep.mubr.f32.mxu0 %v387
        %1077 = vmatmul.mubr.f32.gmra.mrb[0].mxu0 %v386
        %v1078 = vpop.f32.mrb[0].mxu0
        %v1079 = vadd.f32 0.0, %v1078
        %v1080 = vpop.f32.mrb[0].mxu0
        %1081 = vmatprep.mubr.f32.mxu0 %v390
        %1082 = vmatmul.mubr.f32.gmra.mrb[0].mxu0 %v389
        %v1083 = vpop.f32.mrb[0].mxu0
        %v1084 = vadd.f32 0.0, %v1083
        %v1085 = vpop.f32.mrb[0].mxu0
        %1086 = vmatprep.mubr.f32.mxu0 %v393
        %1087 = vmatmul.mubr.f32.gmra.mrb[0].mxu0 %v392
        %v1088 = vpop.f32.mrb[0].mxu0
        %v1089 = vadd.f32 0.0, %v1088
        %v1090 = vpop.f32.mrb[0].mxu0
        %1091 = vmatprep.mubr.f32.mxu0 %v396
        %1092 = vmatmul.mubr.f32.gmra.mrb[0].mxu0 %v395
        %v1093 = vpop.f32.mrb[0].mxu0
        %v1094 = vadd.f32 0.0, %v1093
        %v1095 = vpop.f32.mrb[0].mxu0
        %1096 = vmatprep.mubr.f32.mxu0 %v399
        %1097 = vmatmul.mubr.f32.gmra.mrb[0].mxu0 %v398
        %v1098 = vpop.f32.mrb[0].mxu0
        %v1099 = vadd.f32 0.0, %v1098
        %v1100 = vpop.f32.mrb[0].mxu0
        %1101 = vmatprep.mubr.f32.mxu0 %v402
        %1102 = vmatmul.mubr.f32.gmra.mrb[0].mxu0 %v401
        %v1103 = vpop.f32.mrb[0].mxu0
        %v1104 = vadd.f32 0.0, %v1103
        %v1105 = vpop.f32.mrb[0].mxu0
        %1106 = vmatprep.mubr.f32.mxu0 %v405
        %1107 = vmatmul.mubr.f32.gmra.mrb[0].mxu0 %v404
        %v1108 = vpop.f32.mrb[0].mxu0
        %v1109 = vadd.f32 0.0, %v1108
        %v1110 = vpop.f32.mrb[0].mxu0
        %1111 = vmatprep.mubr.f32.mxu0 %v408
        %1112 = vmatmul.mubr.f32.gmra.mrb[0].mxu0 %v407
        %v1113 = vpop.f32.mrb[0].mxu0
        %v1114 = vadd.f32 0.0, %v1113
        %v1115 = vpop.f32.mrb[0].mxu0
        %1116 = vmatprep.mubr.f32.mxu0 %v411
        %1117 = vmatmul.mubr.f32.gmra.mrb[0].mxu0 %v410
        %v1118 = vpop.f32.mrb[0].mxu0
        %v1119 = vadd.f32 0.0, %v1118
        %v1120 = vpop.f32.mrb[0].mxu0
        %1121 = vmatprep.mubr.f32.mxu0 %v414
        %1122 = vmatmul.mubr.f32.gmra.mrb[0].mxu0 %v413
        %v1123 = vpop.f32.mrb[0].mxu0
        %v1124 = vadd.f32 0.0, %v1123
        %v1125 = vpop.f32.mrb[0].mxu0
        %1126 = vmatprep.mubr.f32.mxu0 %v417
        %1127 = vmatmul.mubr.f32.gmra.mrb[0].mxu0 %v416
        %v1128 = vpop.f32.mrb[0].mxu0
        %v1129 = vadd.f32 0.0, %v1128
        %v1130 = vpop.f32.mrb[0].mxu0
        %1131 = vmatprep.mubr.f32.mxu0 %v420
        %1132 = vmatmul.mubr.f32.gmra.mrb[0].mxu0 %v419
        %v1133 = vpop.f32.mrb[0].mxu0
        %v1134 = vadd.f32 0.0, %v1133
        %v1135 = vpop.f32.mrb[0].mxu0
        %1136 = vmatprep.mubr.f32.mxu0 %v423
        %1137 = vmatmul.mubr.f32.gmra.mrb[0].mxu0 %v422
        %v1138 = vpop.f32.mrb[0].mxu0
        %v1139 = vadd.f32 0.0, %v1138
        %v1140 = vpop.f32.mrb[0].mxu0
        %1141 = vmatprep.mubr.f32.mxu0 %v426
        %1142 = vmatmul.mubr.f32.gmra.mrb[0].mxu0 %v425
        %v1143 = vpop.f32.mrb[0].mxu0
        %v1144 = vadd.f32 0.0, %v1143
        %v1145 = vpop.f32.mrb[0].mxu0
        %1146 = vmatprep.mubr.f32.mxu0 %v429
        %1147 = vmatmul.mubr.f32.gmra.mrb[0].mxu0 %v428
        %v1148 = vpop.f32.mrb[0].mxu0
        %v1149 = vadd.f32 0.0, %v1148
        %v1150 = vpop.f32.mrb[0].mxu0
        %1151 = vmatprep.mubr.f32.mxu0 %v432
        %1152 = vmatmul.mubr.f32.gmra.mrb[0].mxu0 %v431
        %v1153 = vpop.f32.mrb[0].mxu0
        %v1154 = vadd.f32 0.0, %v1153
        %v1155 = vpop.f32.mrb[0].mxu0
        %1156 = vmatprep.mubr.f32.mxu0 %v435
        %1157 = vmatmul.mubr.f32.gmra.mrb[0].mxu0 %v434
        %v1158 = vpop.f32.mrb[0].mxu0
        %v1159 = vadd.f32 0.0, %v1158
        %v1160 = vpop.f32.mrb[0].mxu0
        %1161 = vmatprep.mubr.f32.mxu0 %v438
        %1162 = vmatmul.mubr.f32.gmra.mrb[0].mxu0 %v437
        %v1163 = vpop.f32.mrb[0].mxu0
        %v1164 = vadd.f32 0.0, %v1163
        %v1165 = vpop.f32.mrb[0].mxu0
        %1166 = vmatprep.mubr.f32.mxu0 %v441
        %1167 = vmatmul.mubr.f32.gmra.mrb[0].mxu0 %v440
        %v1168 = vpop.f32.mrb[0].mxu0
        %v1169 = vadd.f32 0.0, %v1168
        %v1170 = vpop.f32.mrb[0].mxu0
        %1171 = vmatprep.mubr.f32.mxu0 %v444
        %1172 = vmatmul.mubr.f32.gmra.mrb[0].mxu0 %v443
        %v1173 = vpop.f32.mrb[0].mxu0
        %v1174 = vadd.f32 0.0, %v1173
        %v1175 = vpop.f32.mrb[0].mxu0
        %1176 = vmatprep.mubr.f32.mxu0 %v447
        %1177 = vmatmul.mubr.f32.gmra.mrb[0].mxu0 %v446
        %v1178 = vpop.f32.mrb[0].mxu0
        %v1179 = vadd.f32 0.0, %v1178
        %v1180 = vpop.f32.mrb[0].mxu0
        %1181 = vmatprep.mubr.f32.mxu0 %v450
        %1182 = vmatmul.mubr.f32.gmra.mrb[0].mxu0 %v449
        %v1183 = vpop.f32.mrb[0].mxu0
        %v1184 = vadd.f32 0.0, %v1183
        %v1185 = vpop.f32.mrb[0].mxu0
        %1186 = vmatprep.mubr.f32.mxu0 %v453
        %1187 = vmatmul.mubr.f32.gmra.mrb[0].mxu0 %v452
        %v1188 = vpop.f32.mrb[0].mxu0
        %v1189 = vadd.f32 0.0, %v1188
        %v1190 = vpop.f32.mrb[0].mxu0
        %1191 = vmatprep.mubr.f32.mxu0 %v456
        %1192 = vmatmul.mubr.f32.gmra.mrb[0].mxu0 %v455
        %v1193 = vpop.f32.mrb[0].mxu0
        %v1194 = vadd.f32 0.0, %v1193
        %v1195 = vpop.f32.mrb[0].mxu0
        %1196 = vmatprep.mubr.f32.mxu0 %v459
        %1197 = vmatmul.mubr.f32.gmra.mrb[0].mxu0 %v458
        %v1198 = vpop.f32.mrb[0].mxu0
        %v1199 = vadd.f32 0.0, %v1198
        %v1200 = vpop.f32.mrb[0].mxu0
        %1201 = vmatprep.mubr.f32.mxu0 %v462
        %1202 = vmatmul.mubr.f32.gmra.mrb[0].mxu0 %v461
        %v1203 = vpop.f32.mrb[0].mxu0
        %v1204 = vadd.f32 0.0, %v1203
        %v1205 = vpop.f32.mrb[0].mxu0
        %1206 = vmatprep.mubr.f32.mxu0 %v465
        %1207 = vmatmul.mubr.f32.gmra.mrb[0].mxu0 %v464
        %v1208 = vpop.f32.mrb[0].mxu0
        %v1209 = vadd.f32 0.0, %v1208
        %v1210 = vpop.f32.mrb[0].mxu0
        %1211 = vmatprep.mubr.f32.mxu0 %v468
        %1212 = vmatmul.mubr.f32.gmra.mrb[0].mxu0 %v467
        %v1213 = vpop.f32.mrb[0].mxu0
        %v1214 = vadd.f32 0.0, %v1213
        %v1215 = vpop.f32.mrb[0].mxu0
        %1216 = vmatprep.mubr.f32.mxu0 %v471
        %1217 = vmatmul.mubr.f32.gmra.mrb[0].mxu0 %v470
        %v1218 = vpop.f32.mrb[0].mxu0
        %v1219 = vadd.f32 0.0, %v1218
        %v1220 = vpop.f32.mrb[0].mxu0
        %1221 = vmatprep.mubr.f32.mxu0 %v474
        %1222 = vmatmul.mubr.f32.gmra.mrb[0].mxu0 %v473
        %v1223 = vpop.f32.mrb[0].mxu0
        %v1224 = vadd.f32 0.0, %v1223
        %v1225 = vpop.f32.mrb[0].mxu0
        %1226 = vmatprep.mubr.f32.mxu0 %v477
        %1227 = vmatmul.mubr.f32.gmra.mrb[0].mxu0 %v476
        %v1228 = vpop.f32.mrb[0].mxu0
        %v1229 = vadd.f32 0.0, %v1228
        %v1230 = vpop.f32.mrb[0].mxu0
        %1231 = vmatprep.mubr.f32.mxu0 %v480
        %1232 = vmatmul.mubr.f32.gmra.mrb[0].mxu0 %v479
        %v1233 = vpop.f32.mrb[0].mxu0
        %v1234 = vadd.f32 0.0, %v1233
        %v1235 = vpop.f32.mrb[0].mxu0
        %1236 = vmatprep.mubr.f32.mxu0 %v483
        %1237 = vmatmul.mubr.f32.gmra.mrb[0].mxu0 %v482
        %v1238 = vpop.f32.mrb[0].mxu0
        %v1239 = vadd.f32 0.0, %v1238
        %v1240 = vpop.f32.mrb[0].mxu0
        %1241 = vmatprep.mubr.f32.mxu0 %v486
        %1242 = vmatmul.mubr.f32.gmra.mrb[0].mxu0 %v485
        %v1243 = vpop.f32.mrb[0].mxu0
        %v1244 = vadd.f32 0.0, %v1243
        %v1245 = vpop.f32.mrb[0].mxu0
        %1246 = vmatprep.mubr.f32.mxu0 %v489
        %1247 = vmatmul.mubr.f32.gmra.mrb[0].mxu0 %v488
        %v1248 = vpop.f32.mrb[0].mxu0
        %v1249 = vadd.f32 0.0, %v1248
        %v1250 = vpop.f32.mrb[0].mxu0
        %1251 = vmatprep.mubr.f32.mxu0 %v492
        %1252 = vmatmul.mubr.f32.gmra.mrb[0].mxu0 %v491
        %v1253 = vpop.f32.mrb[0].mxu0
        %v1254 = vadd.f32 0.0, %v1253
        %v1255 = vpop.f32.mrb[0].mxu0
        %1256 = vmatprep.mubr.f32.mxu0 %v495
        %1257 = vmatmul.mubr.f32.gmra.mrb[0].mxu0 %v494
        %v1258 = vpop.f32.mrb[0].mxu0
        %v1259 = vadd.f32 0.0, %v1258
        %v1260 = vpop.f32.mrb[0].mxu0
        %1261 = vmatprep.mubr.f32.mxu0 %v498
        %1262 = vmatmul.mubr.f32.gmra.mrb[0].mxu0 %v497
        %v1263 = vpop.f32.mrb[0].mxu0
        %v1264 = vadd.f32 0.0, %v1263
        %v1265 = vpop.f32.mrb[0].mxu0
        %1266 = vmatprep.mubr.f32.mxu0 %v501
        %1267 = vmatmul.mubr.f32.gmra.mrb[0].mxu0 %v500
        %v1268 = vpop.f32.mrb[0].mxu0
        %v1269 = vadd.f32 0.0, %v1268
        %v1270 = vpop.f32.mrb[0].mxu0
        %1271 = vmatprep.mubr.f32.mxu0 %v504
        %1272 = vmatmul.mubr.f32.gmra.mrb[0].mxu0 %v503
        %v1273 = vpop.f32.mrb[0].mxu0
        %v1274 = vadd.f32 0.0, %v1273
        %v1275 = vpop.f32.mrb[0].mxu0
        %1276 = vmatprep.mubr.f32.mxu0 %v507
        %1277 = vmatmul.mubr.f32.gmra.mrb[0].mxu0 %v506
        %v1278 = vpop.f32.mrb[0].mxu0
        %v1279 = vadd.f32 0.0, %v1278
        %v1280 = vpop.f32.mrb[0].mxu0
        %1281 = vmatprep.mubr.f32.mxu0 %v510
        %1282 = vmatmul.mubr.f32.gmra.mrb[0].mxu0 %v509
        %v1283 = vpop.f32.mrb[0].mxu0
        %v1284 = vadd.f32 0.0, %v1283
        %v1285 = vpop.f32.mrb[0].mxu0
        %1286 = vmatprep.mubr.f32.mxu0 %v513
        %1287 = vmatmul.mubr.f32.gmra.mrb[0].mxu0 %v512
        %v1288 = vpop.f32.mrb[0].mxu0
        %v1289 = vadd.f32 0.0, %v1288
        %v1290 = vpop.f32.mrb[0].mxu0
        %1291 = vmatprep.mubr.f32.mxu0 %v516
        %1292 = vmatmul.mubr.f32.gmra.mrb[0].mxu0 %v515
        %v1293 = vpop.f32.mrb[0].mxu0
        %v1294 = vadd.f32 0.0, %v1293
        %v1295 = vpop.f32.mrb[0].mxu0
        %1296 = vmatprep.mubr.f32.mxu0 %v519
        %1297 = vmatmul.mubr.f32.gmra.mrb[0].mxu0 %v518
        %v1298 = vpop.f32.mrb[0].mxu0
        %v1299 = vadd.f32 0.0, %v1298
        %v1300 = vpop.f32.mrb[0].mxu0
        %1301 = vmatprep.mubr.f32.mxu0 %v522
        %1302 = vmatmul.mubr.f32.gmra.mrb[0].mxu0 %v521
        %v1303 = vpop.f32.mrb[0].mxu0
        %v1304 = vadd.f32 0.0, %v1303
        %v1305 = vpop.f32.mrb[0].mxu0
        %1306 = vmatprep.mubr.f32.mxu0 %v525
        %1307 = vmatmul.mubr.f32.gmra.mrb[0].mxu0 %v524
        %v1308 = vpop.f32.mrb[0].mxu0
        %v1309 = vadd.f32 0.0, %v1308
        %v1310 = vpop.f32.mrb[0].mxu0
        %1311 = vmatprep.mubr.f32.mxu0 %v528
        %1312 = vmatmul.mubr.f32.gmra.mrb[0].mxu0 %v527
        %v1313 = vpop.f32.mrb[0].mxu0
        %v1314 = vadd.f32 0.0, %v1313
        %v1315 = vpop.f32.mrb[0].mxu0
        %1316 = vmatprep.mubr.f32.mxu0 %v531
        %1317 = vmatmul.mubr.f32.gmra.mrb[0].mxu0 %v530
        %v1318 = vpop.f32.mrb[0].mxu0
        %v1319 = vadd.f32 0.0, %v1318
        %v1320 = vpop.f32.mrb[0].mxu0
        %1321 = vmatprep.mubr.f32.mxu0 %v534
        %1322 = vmatmul.mubr.f32.gmra.mrb[0].mxu0 %v533
        %v1323 = vpop.f32.mrb[0].mxu0
        %v1324 = vadd.f32 0.0, %v1323
        %v1325 = vpop.f32.mrb[0].mxu0
        %1326 = vmatprep.mubr.f32.mxu0 %v537
        %1327 = vmatmul.mubr.f32.gmra.mrb[0].mxu0 %v536
        %v1328 = vpop.f32.mrb[0].mxu0
        %v1329 = vadd.f32 0.0, %v1328
        %v1330 = vpop.f32.mrb[0].mxu0
        %1331 = vmatprep.mubr.f32.mxu0 %v540
        %1332 = vmatmul.mubr.f32.gmra.mrb[0].mxu0 %v539
        %v1333 = vpop.f32.mrb[0].mxu0
        %v1334 = vadd.f32 0.0, %v1333
        %v1335 = vpop.f32.mrb[0].mxu0
        %1336 = vmatprep.mubr.f32.mxu0 %v543
        %1337 = vmatmul.mubr.f32.gmra.mrb[0].mxu0 %v542
        %v1338 = vpop.f32.mrb[0].mxu0
        %v1339 = vadd.f32 0.0, %v1338
        %v1340 = vpop.f32.mrb[0].mxu0
        %1341 = vmatprep.mubr.f32.mxu0 %v546
        %1342 = vmatmul.mubr.f32.gmra.mrb[0].mxu0 %v545
        %v1343 = vpop.f32.mrb[0].mxu0
        %v1344 = vadd.f32 0.0, %v1343
        %v1345 = vpop.f32.mrb[0].mxu0
        %1346 = vmatprep.mubr.f32.mxu0 %v549
        %1347 = vmatmul.mubr.f32.gmra.mrb[0].mxu0 %v548
        %v1348 = vpop.f32.mrb[0].mxu0
        %v1349 = vadd.f32 0.0, %v1348
        %v1350 = vpop.f32.mrb[0].mxu0
        %1351 = vmatprep.mubr.f32.mxu0 %v552
        %1352 = vmatmul.mubr.f32.gmra.mrb[0].mxu0 %v551
        %v1353 = vpop.f32.mrb[0].mxu0
        %v1354 = vadd.f32 0.0, %v1353
        %v1355 = vpop.f32.mrb[0].mxu0
        %1356 = vmatprep.mubr.f32.mxu0 %v555
        %1357 = vmatmul.mubr.f32.gmra.mrb[0].mxu0 %v554
        %v1358 = vpop.f32.mrb[0].mxu0
        %v1359 = vadd.f32 0.0, %v1358
        %v1360 = vpop.f32.mrb[0].mxu0
        %1361 = vmatprep.mubr.f32.mxu0 %v558
        %1362 = vmatmul.mubr.f32.gmra.mrb[0].mxu0 %v557
        %v1363 = vpop.f32.mrb[0].mxu0
        %v1364 = vadd.f32 0.0, %v1363
        %v1365 = vpop.f32.mrb[0].mxu0
        %1366 = vmatprep.mubr.f32.mxu0 %v561
        %1367 = vmatmul.mubr.f32.gmra.mrb[0].mxu0 %v560
        %v1368 = vpop.f32.mrb[0].mxu0
        %v1369 = vadd.f32 0.0, %v1368
        %v1370 = vpop.f32.mrb[0].mxu0
        %1371 = vmatprep.mubr.f32.mxu0 %v564
        %1372 = vmatmul.mubr.f32.gmra.mrb[0].mxu0 %v563
        %v1373 = vpop.f32.mrb[0].mxu0
        %v1374 = vadd.f32 0.0, %v1373
        %v1375 = vpop.f32.mrb[0].mxu0
        %1376 = vmatprep.mubr.f32.mxu0 %v567
        %1377 = vmatmul.mubr.f32.gmra.mrb[0].mxu0 %v566
        %v1378 = vpop.f32.mrb[0].mxu0
        %v1379 = vadd.f32 0.0, %v1378
        %v1380 = vpop.f32.mrb[0].mxu0
        %1381 = vmatprep.mubr.f32.mxu0 %v570
        %1382 = vmatmul.mubr.f32.gmra.mrb[0].mxu0 %v569
        %v1383 = vpop.f32.mrb[0].mxu0
        %v1384 = vadd.f32 0.0, %v1383
        %v1385 = vpop.f32.mrb[0].mxu0
        %1386 = vmatprep.mubr.f32.mxu0 %v573
        %1387 = vmatmul.mubr.f32.gmra.mrb[0].mxu0 %v572
        %v1388 = vpop.f32.mrb[0].mxu0
        %v1389 = vadd.f32 0.0, %v1388
        %v1390 = vpop.f32.mrb[0].mxu0
        %1391 = vmatprep.mubr.f32.mxu0 %v576
        %1392 = vmatmul.mubr.f32.gmra.mrb[0].mxu0 %v575
        %v1393 = vpop.f32.mrb[0].mxu0
        %v1394 = vadd.f32 0.0, %v1393
        %v1395 = vpop.f32.mrb[0].mxu0
        %1396 = vmatprep.mubr.f32.mxu0 %v579
        %1397 = vmatmul.mubr.f32.gmra.mrb[0].mxu0 %v578
        %v1398 = vpop.f32.mrb[0].mxu0
        %v1399 = vadd.f32 0.0, %v1398
        %v1400 = vpop.f32.mrb[0].mxu0
        %1401 = vmatprep.mubr.f32.mxu0 %v582
        %1402 = vmatmul.mubr.f32.gmra.mrb[0].mxu0 %v581
        %v1403 = vpop.f32.mrb[0].mxu0
        %v1404 = vadd.f32 0.0, %v1403
        %v1405 = vpop.f32.mrb[0].mxu0
        %1406 = vmatprep.mubr.f32.mxu0 %v585
        %1407 = vmatmul.mubr.f32.gmra.mrb[0].mxu0 %v584
        %v1408 = vpop.f32.mrb[0].mxu0
        %v1409 = vadd.f32 0.0, %v1408
        %v1410 = vpop.f32.mrb[0].mxu0
        %1411 = vmatprep.mubr.f32.mxu0 %v588
        %1412 = vmatmul.mubr.f32.gmra.mrb[0].mxu0 %v587
        %v1413 = vpop.f32.mrb[0].mxu0
        %v1414 = vadd.f32 0.0, %v1413
        %v1415 = vpop.f32.mrb[0].mxu0
        %1416 = vmatprep.mubr.f32.mxu0 %v591
        %1417 = vmatmul.mubr.f32.gmra.mrb[0].mxu0 %v590
        %v1418 = vpop.f32.mrb[0].mxu0
        %v1419 = vadd.f32 0.0, %v1418
        %v1420 = vpop.f32.mrb[0].mxu0
        %1421 = vmatprep.mubr.f32.mxu0 %v594
        %1422 = vmatmul.mubr.f32.gmra.mrb[0].mxu0 %v593
        %v1423 = vpop.f32.mrb[0].mxu0
        %v1424 = vadd.f32 0.0, %v1423
        %v1425 = vpop.f32.mrb[0].mxu0
        %1426 = vmatprep.mubr.f32.mxu0 %v597
        %1427 = vmatmul.mubr.f32.gmra.mrb[0].mxu0 %v596
        %v1428 = vpop.f32.mrb[0].mxu0
        %v1429 = vadd.f32 0.0, %v1428
        %v1430 = vpop.f32.mrb[0].mxu0
        %1431 = vdwg.mxu0
        %1432 = vmatprep.subr.mxu0 0.0
        %1433 = vmatpush1.msra.mxu0 %v631
        %1434 = vmatprep.subr.mxu0 0.0
        %1435 = vmatpush1.msra.mxu0 %v632
        %1436 = vmatprep.subr.mxu0 0.0
        %1437 = vmatpush1.msra.mxu0 %v633
        %1438 = vmatprep.subr.mxu0 0.0
        %1439 = vmatpush1.msra.mxu0 %v634
        %1440 = vmatprep.subr.mxu0 0.0
        %1441 = vmatpush1.msra.mxu0 %v635
        %1442 = vmatprep.subr.mxu0 0.0
        %1443 = vmatpush1.msra.mxu0 %v636
        %1444 = vmatprep.subr.mxu0 0.0
        %1445 = vmatpush1.msra.mxu0 %v637
        %1446 = vmatprep.subr.mxu0 0.0
        %1447 = vmatpush1.msra.mxu0 %v638
        %1448 = vmatprep.subr.mxu0 0.0
        %1449 = vmatpush1.msra.mxu0 %v639
        %1450 = vmatprep.subr.mxu0 0.0
        %1451 = vmatpush1.msra.mxu0 %v640
        %1452 = vmatprep.subr.mxu0 0.0
        %1453 = vmatpush1.msra.mxu0 %v641
        %1454 = vmatprep.subr.mxu0 0.0
        %1455 = vmatpush1.msra.mxu0 %v642
        %1456 = vmatprep.subr.mxu0 0.0
        %1457 = vmatpush1.msra.mxu0 %v643
        %1458 = vmatprep.subr.mxu0 0.0
        %1459 = vmatpush1.msra.mxu0 %v644
        %1460 = vmatprep.subr.mxu0 0.0
        %1461 = vmatpush1.msra.mxu0 %v645
        %1462 = vmatprep.subr.mxu0 0.0
        %1463 = vmatpush1.msra.mxu0 %v646
        %1464 = vmatprep.subr.mxu0 0.0
        %1465 = vmatpush1.msra.mxu0 0.0
        %1466 = vmatprep.subr.mxu0 0.0
        %1467 = vmatpush1.msra.mxu0 0.0
        %1468 = vmatprep.subr.mxu0 0.0
        %1469 = vmatpush1.msra.mxu0 0.0
        %1470 = vmatprep.subr.mxu0 0.0
        %1471 = vmatpush1.msra.mxu0 0.0
        %1472 = vmatprep.subr.mxu0 0.0
        %1473 = vmatpush1.msra.mxu0 0.0
        %1474 = vmatprep.subr.mxu0 0.0
        %1475 = vmatpush1.msra.mxu0 0.0
        %1476 = vmatprep.subr.mxu0 0.0
        %1477 = vmatpush1.msra.mxu0 0.0
        %1478 = vmatprep.subr.mxu0 0.0
        %1479 = vmatpush1.msra.mxu0 0.0
        %1480 = vmatprep.subr.mxu0 0.0
        %1481 = vmatpush1.msra.mxu0 0.0
        %1482 = vmatprep.subr.mxu0 0.0
        %1483 = vmatpush1.msra.mxu0 0.0
        %1484 = vmatprep.subr.mxu0 0.0
        %1485 = vmatpush1.msra.mxu0 0.0
        %1486 = vmatprep.subr.mxu0 0.0
        %1487 = vmatpush1.msra.mxu0 0.0
        %1488 = vmatprep.subr.mxu0 0.0
        %1489 = vmatpush1.msra.mxu0 0.0
        %1490 = vmatprep.subr.mxu0 0.0
        %1491 = vmatpush1.msra.mxu0 0.0
        %1492 = vmatprep.subr.mxu0 0.0
        %1493 = vmatpush1.msra.mxu0 0.0
        %1494 = vmatprep.subr.mxu0 0.0
        %1495 = vmatpush1.msra.mxu0 0.0
        %1496 = vmatprep.mubr.f32.mxu0 0.0
        %1497 = vmatmul.mubr.f32.gmra.mrb[0].mxu0 %v169
        %v1498 = vpop.f32.mrb[0].mxu0
        %v1499 = vadd.f32 %v714, %v1498
        %v1500 = vpop.f32.mrb[0].mxu0
        %1501 = vmatprep.mubr.f32.mxu0 0.0
        %1502 = vmatmul.mubr.f32.gmra.mrb[0].mxu0 %v172
        %v1503 = vpop.f32.mrb[0].mxu0
        %v1504 = vadd.f32 %v719, %v1503
        %v1505 = vpop.f32.mrb[0].mxu0
        %1506 = vmatprep.mubr.f32.mxu0 0.0
        %1507 = vmatmul.mubr.f32.gmra.mrb[0].mxu0 %v175
        %v1508 = vpop.f32.mrb[0].mxu0
        %v1509 = vadd.f32 %v724, %v1508
        %v1510 = vpop.f32.mrb[0].mxu0
        %1511 = vmatprep.mubr.f32.mxu0 0.0
        %1512 = vmatmul.mubr.f32.gmra.mrb[0].mxu0 %v178
        %v1513 = vpop.f32.mrb[0].mxu0
        %v1514 = vadd.f32 %v729, %v1513
        %v1515 = vpop.f32.mrb[0].mxu0
        %1516 = vmatprep.mubr.f32.mxu0 0.0
        %1517 = vmatmul.mubr.f32.gmra.mrb[0].mxu0 %v181
        %v1518 = vpop.f32.mrb[0].mxu0
        %v1519 = vadd.f32 %v734, %v1518
        %v1520 = vpop.f32.mrb[0].mxu0
        %1521 = vmatprep.mubr.f32.mxu0 0.0
        %1522 = vmatmul.mubr.f32.gmra.mrb[0].mxu0 %v184
        %v1523 = vpop.f32.mrb[0].mxu0
        %v1524 = vadd.f32 %v739, %v1523
        %v1525 = vpop.f32.mrb[0].mxu0
        %1526 = vmatprep.mubr.f32.mxu0 0.0
        %1527 = vmatmul.mubr.f32.gmra.mrb[0].mxu0 %v187
        %v1528 = vpop.f32.mrb[0].mxu0
        %v1529 = vadd.f32 %v744, %v1528
        %v1530 = vpop.f32.mrb[0].mxu0
        %1531 = vmatprep.mubr.f32.mxu0 0.0
        %1532 = vmatmul.mubr.f32.gmra.mrb[0].mxu0 %v190
        %v1533 = vpop.f32.mrb[0].mxu0
        %v1534 = vadd.f32 %v749, %v1533
        %v1535 = vpop.f32.mrb[0].mxu0
        %1536 = vmatprep.mubr.f32.mxu0 0.0
        %1537 = vmatmul.mubr.f32.gmra.mrb[0].mxu0 %v193
        %v1538 = vpop.f32.mrb[0].mxu0
        %v1539 = vadd.f32 %v754, %v1538
        %v1540 = vpop.f32.mrb[0].mxu0
        %1541 = vmatprep.mubr.f32.mxu0 0.0
        %1542 = vmatmul.mubr.f32.gmra.mrb[0].mxu0 %v196
        %v1543 = vpop.f32.mrb[0].mxu0
        %v1544 = vadd.f32 %v759, %v1543
        %v1545 = vpop.f32.mrb[0].mxu0
        %1546 = vmatprep.mubr.f32.mxu0 0.0
        %1547 = vmatmul.mubr.f32.gmra.mrb[0].mxu0 %v199
        %v1548 = vpop.f32.mrb[0].mxu0
        %v1549 = vadd.f32 %v764, %v1548
        %v1550 = vpop.f32.mrb[0].mxu0
        %1551 = vmatprep.mubr.f32.mxu0 0.0
        %1552 = vmatmul.mubr.f32.gmra.mrb[0].mxu0 %v202
        %v1553 = vpop.f32.mrb[0].mxu0
        %v1554 = vadd.f32 %v769, %v1553
        %v1555 = vpop.f32.mrb[0].mxu0
        %1556 = vmatprep.mubr.f32.mxu0 0.0
        %1557 = vmatmul.mubr.f32.gmra.mrb[0].mxu0 %v205
        %v1558 = vpop.f32.mrb[0].mxu0
        %v1559 = vadd.f32 %v774, %v1558
        %v1560 = vpop.f32.mrb[0].mxu0
        %1561 = vmatprep.mubr.f32.mxu0 0.0
        %1562 = vmatmul.mubr.f32.gmra.mrb[0].mxu0 %v208
        %v1563 = vpop.f32.mrb[0].mxu0
        %v1564 = vadd.f32 %v779, %v1563
        %v1565 = vpop.f32.mrb[0].mxu0
        %1566 = vmatprep.mubr.f32.mxu0 0.0
        %1567 = vmatmul.mubr.f32.gmra.mrb[0].mxu0 %v211
        %v1568 = vpop.f32.mrb[0].mxu0
        %v1569 = vadd.f32 %v784, %v1568
        %v1570 = vpop.f32.mrb[0].mxu0
        %1571 = vmatprep.mubr.f32.mxu0 0.0
        %1572 = vmatmul.mubr.f32.gmra.mrb[0].mxu0 %v214
        %v1573 = vpop.f32.mrb[0].mxu0
        %v1574 = vadd.f32 %v789, %v1573
        %v1575 = vpop.f32.mrb[0].mxu0
        %1576 = vmatprep.mubr.f32.mxu0 0.0
        %1577 = vmatmul.mubr.f32.gmra.mrb[0].mxu0 %v217
        %v1578 = vpop.f32.mrb[0].mxu0
        %v1579 = vadd.f32 %v794, %v1578
        %v1580 = vpop.f32.mrb[0].mxu0
        %1581 = vmatprep.mubr.f32.mxu0 0.0
        %1582 = vmatmul.mubr.f32.gmra.mrb[0].mxu0 %v220
        %v1583 = vpop.f32.mrb[0].mxu0
        %v1584 = vadd.f32 %v799, %v1583
        %v1585 = vpop.f32.mrb[0].mxu0
        %1586 = vmatprep.mubr.f32.mxu0 0.0
        %1587 = vmatmul.mubr.f32.gmra.mrb[0].mxu0 %v223
        %v1588 = vpop.f32.mrb[0].mxu0
        %v1589 = vadd.f32 %v804, %v1588
        %v1590 = vpop.f32.mrb[0].mxu0
        %1591 = vmatprep.mubr.f32.mxu0 0.0
        %1592 = vmatmul.mubr.f32.gmra.mrb[0].mxu0 %v226
        %v1593 = vpop.f32.mrb[0].mxu0
        %v1594 = vadd.f32 %v809, %v1593
        %v1595 = vpop.f32.mrb[0].mxu0
        %1596 = vmatprep.mubr.f32.mxu0 0.0
        %1597 = vmatmul.mubr.f32.gmra.mrb[0].mxu0 %v229
        %v1598 = vpop.f32.mrb[0].mxu0
        %v1599 = vadd.f32 %v814, %v1598
        %v1600 = vpop.f32.mrb[0].mxu0
        %1601 = vmatprep.mubr.f32.mxu0 0.0
        %1602 = vmatmul.mubr.f32.gmra.mrb[0].mxu0 %v232
        %v1603 = vpop.f32.mrb[0].mxu0
        %v1604 = vadd.f32 %v819, %v1603
        %v1605 = vpop.f32.mrb[0].mxu0
        %1606 = vmatprep.mubr.f32.mxu0 0.0
        %1607 = vmatmul.mubr.f32.gmra.mrb[0].mxu0 %v235
        %v1608 = vpop.f32.mrb[0].mxu0
        %v1609 = vadd.f32 %v824, %v1608
        %v1610 = vpop.f32.mrb[0].mxu0
        %1611 = vmatprep.mubr.f32.mxu0 0.0
        %1612 = vmatmul.mubr.f32.gmra.mrb[0].mxu0 %v238
        %v1613 = vpop.f32.mrb[0].mxu0
        %v1614 = vadd.f32 %v829, %v1613
        %v1615 = vpop.f32.mrb[0].mxu0
        %1616 = vmatprep.mubr.f32.mxu0 0.0
        %1617 = vmatmul.mubr.f32.gmra.mrb[0].mxu0 %v241
        %v1618 = vpop.f32.mrb[0].mxu0
        %v1619 = vadd.f32 %v834, %v1618
        %v1620 = vpop.f32.mrb[0].mxu0
        %1621 = vmatprep.mubr.f32.mxu0 0.0
        %1622 = vmatmul.mubr.f32.gmra.mrb[0].mxu0 %v244
        %v1623 = vpop.f32.mrb[0].mxu0
        %v1624 = vadd.f32 %v839, %v1623
        %v1625 = vpop.f32.mrb[0].mxu0
        %1626 = vmatprep.mubr.f32.mxu0 0.0
        %1627 = vmatmul.mubr.f32.gmra.mrb[0].mxu0 %v247
        %v1628 = vpop.f32.mrb[0].mxu0
        %v1629 = vadd.f32 %v844, %v1628
        %v1630 = vpop.f32.mrb[0].mxu0
        %1631 = vmatprep.mubr.f32.mxu0 0.0
        %1632 = vmatmul.mubr.f32.gmra.mrb[0].mxu0 %v250
        %v1633 = vpop.f32.mrb[0].mxu0
        %v1634 = vadd.f32 %v849, %v1633
        %v1635 = vpop.f32.mrb[0].mxu0
        %1636 = vmatprep.mubr.f32.mxu0 0.0
        %1637 = vmatmul.mubr.f32.gmra.mrb[0].mxu0 %v253
        %v1638 = vpop.f32.mrb[0].mxu0
        %v1639 = vadd.f32 %v854, %v1638
        %v1640 = vpop.f32.mrb[0].mxu0
        %1641 = vmatprep.mubr.f32.mxu0 0.0
        %1642 = vmatmul.mubr.f32.gmra.mrb[0].mxu0 %v256
        %v1643 = vpop.f32.mrb[0].mxu0
        %v1644 = vadd.f32 %v859, %v1643
        %v1645 = vpop.f32.mrb[0].mxu0
        %1646 = vmatprep.mubr.f32.mxu0 0.0
        %1647 = vmatmul.mubr.f32.gmra.mrb[0].mxu0 %v259
        %v1648 = vpop.f32.mrb[0].mxu0
        %v1649 = vadd.f32 %v864, %v1648
        %v1650 = vpop.f32.mrb[0].mxu0
        %1651 = vmatprep.mubr.f32.mxu0 0.0
        %1652 = vmatmul.mubr.f32.gmra.mrb[0].mxu0 %v262
        %v1653 = vpop.f32.mrb[0].mxu0
        %v1654 = vadd.f32 %v869, %v1653
        %v1655 = vpop.f32.mrb[0].mxu0
        %1656 = vmatprep.mubr.f32.mxu0 0.0
        %1657 = vmatmul.mubr.f32.gmra.mrb[0].mxu0 %v265
        %v1658 = vpop.f32.mrb[0].mxu0
        %v1659 = vadd.f32 %v874, %v1658
        %v1660 = vpop.f32.mrb[0].mxu0
        %1661 = vmatprep.mubr.f32.mxu0 0.0
        %1662 = vmatmul.mubr.f32.gmra.mrb[0].mxu0 %v268
        %v1663 = vpop.f32.mrb[0].mxu0
        %v1664 = vadd.f32 %v879, %v1663
        %v1665 = vpop.f32.mrb[0].mxu0
        %1666 = vmatprep.mubr.f32.mxu0 0.0
        %1667 = vmatmul.mubr.f32.gmra.mrb[0].mxu0 %v271
        %v1668 = vpop.f32.mrb[0].mxu0
        %v1669 = vadd.f32 %v884, %v1668
        %v1670 = vpop.f32.mrb[0].mxu0
        %1671 = vmatprep.mubr.f32.mxu0 0.0
        %1672 = vmatmul.mubr.f32.gmra.mrb[0].mxu0 %v274
        %v1673 = vpop.f32.mrb[0].mxu0
        %v1674 = vadd.f32 %v889, %v1673
        %v1675 = vpop.f32.mrb[0].mxu0
        %1676 = vmatprep.mubr.f32.mxu0 0.0
        %1677 = vmatmul.mubr.f32.gmra.mrb[0].mxu0 %v277
        %v1678 = vpop.f32.mrb[0].mxu0
        %v1679 = vadd.f32 %v894, %v1678
        %v1680 = vpop.f32.mrb[0].mxu0
        %1681 = vmatprep.mubr.f32.mxu0 0.0
        %1682 = vmatmul.mubr.f32.gmra.mrb[0].mxu0 %v280
        %v1683 = vpop.f32.mrb[0].mxu0
        %v1684 = vadd.f32 %v899, %v1683
        %v1685 = vpop.f32.mrb[0].mxu0
        %1686 = vmatprep.mubr.f32.mxu0 0.0
        %1687 = vmatmul.mubr.f32.gmra.mrb[0].mxu0 %v283
        %v1688 = vpop.f32.mrb[0].mxu0
        %v1689 = vadd.f32 %v904, %v1688
        %v1690 = vpop.f32.mrb[0].mxu0
        %1691 = vmatprep.mubr.f32.mxu0 0.0
        %1692 = vmatmul.mubr.f32.gmra.mrb[0].mxu0 %v286
        %v1693 = vpop.f32.mrb[0].mxu0
        %v1694 = vadd.f32 %v909, %v1693
        %v1695 = vpop.f32.mrb[0].mxu0
        %1696 = vmatprep.mubr.f32.mxu0 0.0
        %1697 = vmatmul.mubr.f32.gmra.mrb[0].mxu0 %v289
        %v1698 = vpop.f32.mrb[0].mxu0
        %v1699 = vadd.f32 %v914, %v1698
        %v1700 = vpop.f32.mrb[0].mxu0
        %1701 = vmatprep.mubr.f32.mxu0 0.0
        %1702 = vmatmul.mubr.f32.gmra.mrb[0].mxu0 %v292
        %v1703 = vpop.f32.mrb[0].mxu0
        %v1704 = vadd.f32 %v919, %v1703
        %v1705 = vpop.f32.mrb[0].mxu0
        %1706 = vmatprep.mubr.f32.mxu0 0.0
        %1707 = vmatmul.mubr.f32.gmra.mrb[0].mxu0 %v295
        %v1708 = vpop.f32.mrb[0].mxu0
        %v1709 = vadd.f32 %v924, %v1708
        %v1710 = vpop.f32.mrb[0].mxu0
        %1711 = vmatprep.mubr.f32.mxu0 0.0
        %1712 = vmatmul.mubr.f32.gmra.mrb[0].mxu0 %v298
        %v1713 = vpop.f32.mrb[0].mxu0
        %v1714 = vadd.f32 %v929, %v1713
        %v1715 = vpop.f32.mrb[0].mxu0
        %1716 = vmatprep.mubr.f32.mxu0 0.0
        %1717 = vmatmul.mubr.f32.gmra.mrb[0].mxu0 %v301
        %v1718 = vpop.f32.mrb[0].mxu0
        %v1719 = vadd.f32 %v934, %v1718
        %v1720 = vpop.f32.mrb[0].mxu0
        %1721 = vmatprep.mubr.f32.mxu0 0.0
        %1722 = vmatmul.mubr.f32.gmra.mrb[0].mxu0 %v304
        %v1723 = vpop.f32.mrb[0].mxu0
        %v1724 = vadd.f32 %v939, %v1723
        %v1725 = vpop.f32.mrb[0].mxu0
        %1726 = vmatprep.mubr.f32.mxu0 0.0
        %1727 = vmatmul.mubr.f32.gmra.mrb[0].mxu0 %v307
        %v1728 = vpop.f32.mrb[0].mxu0
        %v1729 = vadd.f32 %v944, %v1728
        %v1730 = vpop.f32.mrb[0].mxu0
        %1731 = vmatprep.mubr.f32.mxu0 0.0
        %1732 = vmatmul.mubr.f32.gmra.mrb[0].mxu0 %v310
        %v1733 = vpop.f32.mrb[0].mxu0
        %v1734 = vadd.f32 %v949, %v1733
        %v1735 = vpop.f32.mrb[0].mxu0
        %1736 = vmatprep.mubr.f32.mxu0 0.0
        %1737 = vmatmul.mubr.f32.gmra.mrb[0].mxu0 %v313
        %v1738 = vpop.f32.mrb[0].mxu0
        %v1739 = vadd.f32 %v954, %v1738
        %v1740 = vpop.f32.mrb[0].mxu0
        %1741 = vmatprep.mubr.f32.mxu0 0.0
        %1742 = vmatmul.mubr.f32.gmra.mrb[0].mxu0 %v316
        %v1743 = vpop.f32.mrb[0].mxu0
        %v1744 = vadd.f32 %v959, %v1743
        %v1745 = vpop.f32.mrb[0].mxu0
        %1746 = vmatprep.mubr.f32.mxu0 0.0
        %1747 = vmatmul.mubr.f32.gmra.mrb[0].mxu0 %v319
        %v1748 = vpop.f32.mrb[0].mxu0
        %v1749 = vadd.f32 %v964, %v1748
        %v1750 = vpop.f32.mrb[0].mxu0
        %1751 = vmatprep.mubr.f32.mxu0 0.0
        %1752 = vmatmul.mubr.f32.gmra.mrb[0].mxu0 %v322
        %v1753 = vpop.f32.mrb[0].mxu0
        %v1754 = vadd.f32 %v969, %v1753
        %v1755 = vpop.f32.mrb[0].mxu0
        %1756 = vmatprep.mubr.f32.mxu0 0.0
        %1757 = vmatmul.mubr.f32.gmra.mrb[0].mxu0 %v325
        %v1758 = vpop.f32.mrb[0].mxu0
        %v1759 = vadd.f32 %v974, %v1758
        %v1760 = vpop.f32.mrb[0].mxu0
        %1761 = vmatprep.mubr.f32.mxu0 0.0
        %1762 = vmatmul.mubr.f32.gmra.mrb[0].mxu0 %v328
        %v1763 = vpop.f32.mrb[0].mxu0
        %v1764 = vadd.f32 %v979, %v1763
        %v1765 = vpop.f32.mrb[0].mxu0
        %1766 = vmatprep.mubr.f32.mxu0 0.0
        %1767 = vmatmul.mubr.f32.gmra.mrb[0].mxu0 %v331
        %v1768 = vpop.f32.mrb[0].mxu0
        %v1769 = vadd.f32 %v984, %v1768
        %v1770 = vpop.f32.mrb[0].mxu0
        %1771 = vmatprep.mubr.f32.mxu0 0.0
        %1772 = vmatmul.mubr.f32.gmra.mrb[0].mxu0 %v334
        %v1773 = vpop.f32.mrb[0].mxu0
        %v1774 = vadd.f32 %v989, %v1773
        %v1775 = vpop.f32.mrb[0].mxu0
        %1776 = vmatprep.mubr.f32.mxu0 0.0
        %1777 = vmatmul.mubr.f32.gmra.mrb[0].mxu0 %v337
        %v1778 = vpop.f32.mrb[0].mxu0
        %v1779 = vadd.f32 %v994, %v1778
        %v1780 = vpop.f32.mrb[0].mxu0
        %1781 = vmatprep.mubr.f32.mxu0 0.0
        %1782 = vmatmul.mubr.f32.gmra.mrb[0].mxu0 %v340
        %v1783 = vpop.f32.mrb[0].mxu0
        %v1784 = vadd.f32 %v999, %v1783
        %v1785 = vpop.f32.mrb[0].mxu0
        %1786 = vmatprep.mubr.f32.mxu0 0.0
        %1787 = vmatmul.mubr.f32.gmra.mrb[0].mxu0 %v343
        %v1788 = vpop.f32.mrb[0].mxu0
        %v1789 = vadd.f32 %v1004, %v1788
        %v1790 = vpop.f32.mrb[0].mxu0
        %1791 = vmatprep.mubr.f32.mxu0 0.0
        %1792 = vmatmul.mubr.f32.gmra.mrb[0].mxu0 %v346
        %v1793 = vpop.f32.mrb[0].mxu0
        %v1794 = vadd.f32 %v1009, %v1793
        %v1795 = vpop.f32.mrb[0].mxu0
        %1796 = vmatprep.mubr.f32.mxu0 0.0
        %1797 = vmatmul.mubr.f32.gmra.mrb[0].mxu0 %v349
        %v1798 = vpop.f32.mrb[0].mxu0
        %v1799 = vadd.f32 %v1014, %v1798
        %v1800 = vpop.f32.mrb[0].mxu0
        %1801 = vmatprep.mubr.f32.mxu0 0.0
        %1802 = vmatmul.mubr.f32.gmra.mrb[0].mxu0 %v352
        %v1803 = vpop.f32.mrb[0].mxu0
        %v1804 = vadd.f32 %v1019, %v1803
        %v1805 = vpop.f32.mrb[0].mxu0
        %1806 = vmatprep.mubr.f32.mxu0 0.0
        %1807 = vmatmul.mubr.f32.gmra.mrb[0].mxu0 %v355
        %v1808 = vpop.f32.mrb[0].mxu0
        %v1809 = vadd.f32 %v1024, %v1808
        %v1810 = vpop.f32.mrb[0].mxu0
        %1811 = vmatprep.mubr.f32.mxu0 0.0
        %1812 = vmatmul.mubr.f32.gmra.mrb[0].mxu0 %v358
        %v1813 = vpop.f32.mrb[0].mxu0
        %v1814 = vadd.f32 %v1029, %v1813
        %v1815 = vpop.f32.mrb[0].mxu0
        %1816 = vmatprep.mubr.f32.mxu0 0.0
        %1817 = vmatmul.mubr.f32.gmra.mrb[0].mxu0 %v361
        %v1818 = vpop.f32.mrb[0].mxu0
        %v1819 = vadd.f32 %v1034, %v1818
        %v1820 = vpop.f32.mrb[0].mxu0
        %1821 = vmatprep.mubr.f32.mxu0 0.0
        %1822 = vmatmul.mubr.f32.gmra.mrb[0].mxu0 %v364
        %v1823 = vpop.f32.mrb[0].mxu0
        %v1824 = vadd.f32 %v1039, %v1823
        %v1825 = vpop.f32.mrb[0].mxu0
        %1826 = vmatprep.mubr.f32.mxu0 0.0
        %1827 = vmatmul.mubr.f32.gmra.mrb[0].mxu0 %v367
        %v1828 = vpop.f32.mrb[0].mxu0
        %v1829 = vadd.f32 %v1044, %v1828
        %v1830 = vpop.f32.mrb[0].mxu0
        %1831 = vmatprep.mubr.f32.mxu0 0.0
        %1832 = vmatmul.mubr.f32.gmra.mrb[0].mxu0 %v370
        %v1833 = vpop.f32.mrb[0].mxu0
        %v1834 = vadd.f32 %v1049, %v1833
        %v1835 = vpop.f32.mrb[0].mxu0
        %1836 = vmatprep.mubr.f32.mxu0 0.0
        %1837 = vmatmul.mubr.f32.gmra.mrb[0].mxu0 %v373
        %v1838 = vpop.f32.mrb[0].mxu0
        %v1839 = vadd.f32 %v1054, %v1838
        %v1840 = vpop.f32.mrb[0].mxu0
        %1841 = vmatprep.mubr.f32.mxu0 0.0
        %1842 = vmatmul.mubr.f32.gmra.mrb[0].mxu0 %v376
        %v1843 = vpop.f32.mrb[0].mxu0
        %v1844 = vadd.f32 %v1059, %v1843
        %v1845 = vpop.f32.mrb[0].mxu0
        %1846 = vmatprep.mubr.f32.mxu0 0.0
        %1847 = vmatmul.mubr.f32.gmra.mrb[0].mxu0 %v379
        %v1848 = vpop.f32.mrb[0].mxu0
        %v1849 = vadd.f32 %v1064, %v1848
        %v1850 = vpop.f32.mrb[0].mxu0
        %1851 = vmatprep.mubr.f32.mxu0 0.0
        %1852 = vmatmul.mubr.f32.gmra.mrb[0].mxu0 %v382
        %v1853 = vpop.f32.mrb[0].mxu0
        %v1854 = vadd.f32 %v1069, %v1853
        %v1855 = vpop.f32.mrb[0].mxu0
        %1856 = vmatprep.mubr.f32.mxu0 0.0
        %1857 = vmatmul.mubr.f32.gmra.mrb[0].mxu0 %v385
        %v1858 = vpop.f32.mrb[0].mxu0
        %v1859 = vadd.f32 %v1074, %v1858
        %v1860 = vpop.f32.mrb[0].mxu0
        %1861 = vmatprep.mubr.f32.mxu0 0.0
        %1862 = vmatmul.mubr.f32.gmra.mrb[0].mxu0 %v388
        %v1863 = vpop.f32.mrb[0].mxu0
        %v1864 = vadd.f32 %v1079, %v1863
        %v1865 = vpop.f32.mrb[0].mxu0
        %1866 = vmatprep.mubr.f32.mxu0 0.0
        %1867 = vmatmul.mubr.f32.gmra.mrb[0].mxu0 %v391
        %v1868 = vpop.f32.mrb[0].mxu0
        %v1869 = vadd.f32 %v1084, %v1868
        %v1870 = vpop.f32.mrb[0].mxu0
        %1871 = vmatprep.mubr.f32.mxu0 0.0
        %1872 = vmatmul.mubr.f32.gmra.mrb[0].mxu0 %v394
        %v1873 = vpop.f32.mrb[0].mxu0
        %v1874 = vadd.f32 %v1089, %v1873
        %v1875 = vpop.f32.mrb[0].mxu0
        %1876 = vmatprep.mubr.f32.mxu0 0.0
        %1877 = vmatmul.mubr.f32.gmra.mrb[0].mxu0 %v397
        %v1878 = vpop.f32.mrb[0].mxu0
        %v1879 = vadd.f32 %v1094, %v1878
        %v1880 = vpop.f32.mrb[0].mxu0
        %1881 = vmatprep.mubr.f32.mxu0 0.0
        %1882 = vmatmul.mubr.f32.gmra.mrb[0].mxu0 %v400
        %v1883 = vpop.f32.mrb[0].mxu0
        %v1884 = vadd.f32 %v1099, %v1883
        %v1885 = vpop.f32.mrb[0].mxu0
        %1886 = vmatprep.mubr.f32.mxu0 0.0
        %1887 = vmatmul.mubr.f32.gmra.mrb[0].mxu0 %v403
        %v1888 = vpop.f32.mrb[0].mxu0
        %v1889 = vadd.f32 %v1104, %v1888
        %v1890 = vpop.f32.mrb[0].mxu0
        %1891 = vmatprep.mubr.f32.mxu0 0.0
        %1892 = vmatmul.mubr.f32.gmra.mrb[0].mxu0 %v406
        %v1893 = vpop.f32.mrb[0].mxu0
        %v1894 = vadd.f32 %v1109, %v1893
        %v1895 = vpop.f32.mrb[0].mxu0
        %1896 = vmatprep.mubr.f32.mxu0 0.0
        %1897 = vmatmul.mubr.f32.gmra.mrb[0].mxu0 %v409
        %v1898 = vpop.f32.mrb[0].mxu0
        %v1899 = vadd.f32 %v1114, %v1898
        %v1900 = vpop.f32.mrb[0].mxu0
        %1901 = vmatprep.mubr.f32.mxu0 0.0
        %1902 = vmatmul.mubr.f32.gmra.mrb[0].mxu0 %v412
        %v1903 = vpop.f32.mrb[0].mxu0
        %v1904 = vadd.f32 %v1119, %v1903
        %v1905 = vpop.f32.mrb[0].mxu0
        %1906 = vmatprep.mubr.f32.mxu0 0.0
        %1907 = vmatmul.mubr.f32.gmra.mrb[0].mxu0 %v415
        %v1908 = vpop.f32.mrb[0].mxu0
        %v1909 = vadd.f32 %v1124, %v1908
        %v1910 = vpop.f32.mrb[0].mxu0
        %1911 = vmatprep.mubr.f32.mxu0 0.0
        %1912 = vmatmul.mubr.f32.gmra.mrb[0].mxu0 %v418
        %v1913 = vpop.f32.mrb[0].mxu0
        %v1914 = vadd.f32 %v1129, %v1913
        %v1915 = vpop.f32.mrb[0].mxu0
        %1916 = vmatprep.mubr.f32.mxu0 0.0
        %1917 = vmatmul.mubr.f32.gmra.mrb[0].mxu0 %v421
        %v1918 = vpop.f32.mrb[0].mxu0
        %v1919 = vadd.f32 %v1134, %v1918
        %v1920 = vpop.f32.mrb[0].mxu0
        %1921 = vmatprep.mubr.f32.mxu0 0.0
        %1922 = vmatmul.mubr.f32.gmra.mrb[0].mxu0 %v424
        %v1923 = vpop.f32.mrb[0].mxu0
        %v1924 = vadd.f32 %v1139, %v1923
        %v1925 = vpop.f32.mrb[0].mxu0
        %1926 = vmatprep.mubr.f32.mxu0 0.0
        %1927 = vmatmul.mubr.f32.gmra.mrb[0].mxu0 %v427
        %v1928 = vpop.f32.mrb[0].mxu0
        %v1929 = vadd.f32 %v1144, %v1928
        %v1930 = vpop.f32.mrb[0].mxu0
        %1931 = vmatprep.mubr.f32.mxu0 0.0
        %1932 = vmatmul.mubr.f32.gmra.mrb[0].mxu0 %v430
        %v1933 = vpop.f32.mrb[0].mxu0
        %v1934 = vadd.f32 %v1149, %v1933
        %v1935 = vpop.f32.mrb[0].mxu0
        %1936 = vmatprep.mubr.f32.mxu0 0.0
        %1937 = vmatmul.mubr.f32.gmra.mrb[0].mxu0 %v433
        %v1938 = vpop.f32.mrb[0].mxu0
        %v1939 = vadd.f32 %v1154, %v1938
        %v1940 = vpop.f32.mrb[0].mxu0
        %1941 = vmatprep.mubr.f32.mxu0 0.0
        %1942 = vmatmul.mubr.f32.gmra.mrb[0].mxu0 %v436
        %v1943 = vpop.f32.mrb[0].mxu0
        %v1944 = vadd.f32 %v1159, %v1943
        %v1945 = vpop.f32.mrb[0].mxu0
        %1946 = vmatprep.mubr.f32.mxu0 0.0
        %1947 = vmatmul.mubr.f32.gmra.mrb[0].mxu0 %v439
        %v1948 = vpop.f32.mrb[0].mxu0
        %v1949 = vadd.f32 %v1164, %v1948
        %v1950 = vpop.f32.mrb[0].mxu0
        %1951 = vmatprep.mubr.f32.mxu0 0.0
        %1952 = vmatmul.mubr.f32.gmra.mrb[0].mxu0 %v442
        %v1953 = vpop.f32.mrb[0].mxu0
        %v1954 = vadd.f32 %v1169, %v1953
        %v1955 = vpop.f32.mrb[0].mxu0
        %1956 = vmatprep.mubr.f32.mxu0 0.0
        %1957 = vmatmul.mubr.f32.gmra.mrb[0].mxu0 %v445
        %v1958 = vpop.f32.mrb[0].mxu0
        %v1959 = vadd.f32 %v1174, %v1958
        %v1960 = vpop.f32.mrb[0].mxu0
        %1961 = vmatprep.mubr.f32.mxu0 0.0
        %1962 = vmatmul.mubr.f32.gmra.mrb[0].mxu0 %v448
        %v1963 = vpop.f32.mrb[0].mxu0
        %v1964 = vadd.f32 %v1179, %v1963
        %v1965 = vpop.f32.mrb[0].mxu0
        %1966 = vmatprep.mubr.f32.mxu0 0.0
        %1967 = vmatmul.mubr.f32.gmra.mrb[0].mxu0 %v451
        %v1968 = vpop.f32.mrb[0].mxu0
        %v1969 = vadd.f32 %v1184, %v1968
        %v1970 = vpop.f32.mrb[0].mxu0
        %1971 = vmatprep.mubr.f32.mxu0 0.0
        %1972 = vmatmul.mubr.f32.gmra.mrb[0].mxu0 %v454
        %v1973 = vpop.f32.mrb[0].mxu0
        %v1974 = vadd.f32 %v1189, %v1973
        %v1975 = vpop.f32.mrb[0].mxu0
        %1976 = vmatprep.mubr.f32.mxu0 0.0
        %1977 = vmatmul.mubr.f32.gmra.mrb[0].mxu0 %v457
        %v1978 = vpop.f32.mrb[0].mxu0
        %v1979 = vadd.f32 %v1194, %v1978
        %v1980 = vpop.f32.mrb[0].mxu0
        %1981 = vmatprep.mubr.f32.mxu0 0.0
        %1982 = vmatmul.mubr.f32.gmra.mrb[0].mxu0 %v460
        %v1983 = vpop.f32.mrb[0].mxu0
        %v1984 = vadd.f32 %v1199, %v1983
        %v1985 = vpop.f32.mrb[0].mxu0
        %1986 = vmatprep.mubr.f32.mxu0 0.0
        %1987 = vmatmul.mubr.f32.gmra.mrb[0].mxu0 %v463
        %v1988 = vpop.f32.mrb[0].mxu0
        %v1989 = vadd.f32 %v1204, %v1988
        %v1990 = vpop.f32.mrb[0].mxu0
        %1991 = vmatprep.mubr.f32.mxu0 0.0
        %1992 = vmatmul.mubr.f32.gmra.mrb[0].mxu0 %v466
        %v1993 = vpop.f32.mrb[0].mxu0
        %v1994 = vadd.f32 %v1209, %v1993
        %v1995 = vpop.f32.mrb[0].mxu0
        %1996 = vmatprep.mubr.f32.mxu0 0.0
        %1997 = vmatmul.mubr.f32.gmra.mrb[0].mxu0 %v469
        %v1998 = vpop.f32.mrb[0].mxu0
        %v1999 = vadd.f32 %v1214, %v1998
        %v2000 = vpop.f32.mrb[0].mxu0
        %2001 = vmatprep.mubr.f32.mxu0 0.0
        %2002 = vmatmul.mubr.f32.gmra.mrb[0].mxu0 %v472
        %v2003 = vpop.f32.mrb[0].mxu0
        %v2004 = vadd.f32 %v1219, %v2003
        %v2005 = vpop.f32.mrb[0].mxu0
        %2006 = vmatprep.mubr.f32.mxu0 0.0
        %2007 = vmatmul.mubr.f32.gmra.mrb[0].mxu0 %v475
        %v2008 = vpop.f32.mrb[0].mxu0
        %v2009 = vadd.f32 %v1224, %v2008
        %v2010 = vpop.f32.mrb[0].mxu0
        %2011 = vmatprep.mubr.f32.mxu0 0.0
        %2012 = vmatmul.mubr.f32.gmra.mrb[0].mxu0 %v478
        %v2013 = vpop.f32.mrb[0].mxu0
        %v2014 = vadd.f32 %v1229, %v2013
        %v2015 = vpop.f32.mrb[0].mxu0
        %2016 = vmatprep.mubr.f32.mxu0 0.0
        %2017 = vmatmul.mubr.f32.gmra.mrb[0].mxu0 %v481
        %v2018 = vpop.f32.mrb[0].mxu0
        %v2019 = vadd.f32 %v1234, %v2018
        %v2020 = vpop.f32.mrb[0].mxu0
        %2021 = vmatprep.mubr.f32.mxu0 0.0
        %2022 = vmatmul.mubr.f32.gmra.mrb[0].mxu0 %v484
        %v2023 = vpop.f32.mrb[0].mxu0
        %v2024 = vadd.f32 %v1239, %v2023
        %v2025 = vpop.f32.mrb[0].mxu0
        %2026 = vmatprep.mubr.f32.mxu0 0.0
        %2027 = vmatmul.mubr.f32.gmra.mrb[0].mxu0 %v487
        %v2028 = vpop.f32.mrb[0].mxu0
        %v2029 = vadd.f32 %v1244, %v2028
        %v2030 = vpop.f32.mrb[0].mxu0
        %2031 = vmatprep.mubr.f32.mxu0 0.0
        %2032 = vmatmul.mubr.f32.gmra.mrb[0].mxu0 %v490
        %v2033 = vpop.f32.mrb[0].mxu0
        %v2034 = vadd.f32 %v1249, %v2033
        %v2035 = vpop.f32.mrb[0].mxu0
        %2036 = vmatprep.mubr.f32.mxu0 0.0
        %2037 = vmatmul.mubr.f32.gmra.mrb[0].mxu0 %v493
        %v2038 = vpop.f32.mrb[0].mxu0
        %v2039 = vadd.f32 %v1254, %v2038
        %v2040 = vpop.f32.mrb[0].mxu0
        %2041 = vmatprep.mubr.f32.mxu0 0.0
        %2042 = vmatmul.mubr.f32.gmra.mrb[0].mxu0 %v496
        %v2043 = vpop.f32.mrb[0].mxu0
        %v2044 = vadd.f32 %v1259, %v2043
        %v2045 = vpop.f32.mrb[0].mxu0
        %2046 = vmatprep.mubr.f32.mxu0 0.0
        %2047 = vmatmul.mubr.f32.gmra.mrb[0].mxu0 %v499
        %v2048 = vpop.f32.mrb[0].mxu0
        %v2049 = vadd.f32 %v1264, %v2048
        %v2050 = vpop.f32.mrb[0].mxu0
        %2051 = vmatprep.mubr.f32.mxu0 0.0
        %2052 = vmatmul.mubr.f32.gmra.mrb[0].mxu0 %v502
        %v2053 = vpop.f32.mrb[0].mxu0
        %v2054 = vadd.f32 %v1269, %v2053
        %v2055 = vpop.f32.mrb[0].mxu0
        %2056 = vmatprep.mubr.f32.mxu0 0.0
        %2057 = vmatmul.mubr.f32.gmra.mrb[0].mxu0 %v505
        %v2058 = vpop.f32.mrb[0].mxu0
        %v2059 = vadd.f32 %v1274, %v2058
        %v2060 = vpop.f32.mrb[0].mxu0
        %2061 = vmatprep.mubr.f32.mxu0 0.0
        %2062 = vmatmul.mubr.f32.gmra.mrb[0].mxu0 %v508
        %v2063 = vpop.f32.mrb[0].mxu0
        %v2064 = vadd.f32 %v1279, %v2063
        %v2065 = vpop.f32.mrb[0].mxu0
        %2066 = vmatprep.mubr.f32.mxu0 0.0
        %2067 = vmatmul.mubr.f32.gmra.mrb[0].mxu0 %v511
        %v2068 = vpop.f32.mrb[0].mxu0
        %v2069 = vadd.f32 %v1284, %v2068
        %v2070 = vpop.f32.mrb[0].mxu0
        %2071 = vmatprep.mubr.f32.mxu0 0.0
        %2072 = vmatmul.mubr.f32.gmra.mrb[0].mxu0 %v514
        %v2073 = vpop.f32.mrb[0].mxu0
        %v2074 = vadd.f32 %v1289, %v2073
        %v2075 = vpop.f32.mrb[0].mxu0
        %2076 = vmatprep.mubr.f32.mxu0 0.0
        %2077 = vmatmul.mubr.f32.gmra.mrb[0].mxu0 %v517
        %v2078 = vpop.f32.mrb[0].mxu0
        %v2079 = vadd.f32 %v1294, %v2078
        %v2080 = vpop.f32.mrb[0].mxu0
        %2081 = vmatprep.mubr.f32.mxu0 0.0
        %2082 = vmatmul.mubr.f32.gmra.mrb[0].mxu0 %v520
        %v2083 = vpop.f32.mrb[0].mxu0
        %v2084 = vadd.f32 %v1299, %v2083
        %v2085 = vpop.f32.mrb[0].mxu0
        %2086 = vmatprep.mubr.f32.mxu0 0.0
        %2087 = vmatmul.mubr.f32.gmra.mrb[0].mxu0 %v523
        %v2088 = vpop.f32.mrb[0].mxu0
        %v2089 = vadd.f32 %v1304, %v2088
        %v2090 = vpop.f32.mrb[0].mxu0
        %2091 = vmatprep.mubr.f32.mxu0 0.0
        %2092 = vmatmul.mubr.f32.gmra.mrb[0].mxu0 %v526
        %v2093 = vpop.f32.mrb[0].mxu0
        %v2094 = vadd.f32 %v1309, %v2093
        %v2095 = vpop.f32.mrb[0].mxu0
        %2096 = vmatprep.mubr.f32.mxu0 0.0
        %2097 = vmatmul.mubr.f32.gmra.mrb[0].mxu0 %v529
        %v2098 = vpop.f32.mrb[0].mxu0
        %v2099 = vadd.f32 %v1314, %v2098
        %v2100 = vpop.f32.mrb[0].mxu0
        %2101 = vmatprep.mubr.f32.mxu0 0.0
        %2102 = vmatmul.mubr.f32.gmra.mrb[0].mxu0 %v532
        %v2103 = vpop.f32.mrb[0].mxu0
        %v2104 = vadd.f32 %v1319, %v2103
        %v2105 = vpop.f32.mrb[0].mxu0
        %2106 = vmatprep.mubr.f32.mxu0 0.0
        %2107 = vmatmul.mubr.f32.gmra.mrb[0].mxu0 %v535
        %v2108 = vpop.f32.mrb[0].mxu0
        %v2109 = vadd.f32 %v1324, %v2108
        %v2110 = vpop.f32.mrb[0].mxu0
        %2111 = vmatprep.mubr.f32.mxu0 0.0
        %2112 = vmatmul.mubr.f32.gmra.mrb[0].mxu0 %v538
        %v2113 = vpop.f32.mrb[0].mxu0
        %v2114 = vadd.f32 %v1329, %v2113
        %v2115 = vpop.f32.mrb[0].mxu0
        %2116 = vmatprep.mubr.f32.mxu0 0.0
        %2117 = vmatmul.mubr.f32.gmra.mrb[0].mxu0 %v541
        %v2118 = vpop.f32.mrb[0].mxu0
        %v2119 = vadd.f32 %v1334, %v2118
        %v2120 = vpop.f32.mrb[0].mxu0
        %2121 = vmatprep.mubr.f32.mxu0 0.0
        %2122 = vmatmul.mubr.f32.gmra.mrb[0].mxu0 %v544
        %v2123 = vpop.f32.mrb[0].mxu0
        %v2124 = vadd.f32 %v1339, %v2123
        %v2125 = vpop.f32.mrb[0].mxu0
        %2126 = vmatprep.mubr.f32.mxu0 0.0
        %2127 = vmatmul.mubr.f32.gmra.mrb[0].mxu0 %v547
        %v2128 = vpop.f32.mrb[0].mxu0
        %v2129 = vadd.f32 %v1344, %v2128
        %v2130 = vpop.f32.mrb[0].mxu0
        %2131 = vmatprep.mubr.f32.mxu0 0.0
        %2132 = vmatmul.mubr.f32.gmra.mrb[0].mxu0 %v550
        %v2133 = vpop.f32.mrb[0].mxu0
        %v2134 = vadd.f32 %v1349, %v2133
        %v2135 = vpop.f32.mrb[0].mxu0
        %2136 = vmatprep.mubr.f32.mxu0 0.0
        %2137 = vmatmul.mubr.f32.gmra.mrb[0].mxu0 %v553
        %v2138 = vpop.f32.mrb[0].mxu0
        %v2139 = vadd.f32 %v1354, %v2138
        %v2140 = vpop.f32.mrb[0].mxu0
        %2141 = vmatprep.mubr.f32.mxu0 0.0
        %2142 = vmatmul.mubr.f32.gmra.mrb[0].mxu0 %v556
        %v2143 = vpop.f32.mrb[0].mxu0
        %v2144 = vadd.f32 %v1359, %v2143
        %v2145 = vpop.f32.mrb[0].mxu0
        %2146 = vmatprep.mubr.f32.mxu0 0.0
        %2147 = vmatmul.mubr.f32.gmra.mrb[0].mxu0 %v559
        %v2148 = vpop.f32.mrb[0].mxu0
        %v2149 = vadd.f32 %v1364, %v2148
        %v2150 = vpop.f32.mrb[0].mxu0
        %2151 = vmatprep.mubr.f32.mxu0 0.0
        %2152 = vmatmul.mubr.f32.gmra.mrb[0].mxu0 %v562
        %v2153 = vpop.f32.mrb[0].mxu0
        %v2154 = vadd.f32 %v1369, %v2153
        %v2155 = vpop.f32.mrb[0].mxu0
        %2156 = vmatprep.mubr.f32.mxu0 0.0
        %2157 = vmatmul.mubr.f32.gmra.mrb[0].mxu0 %v565
        %v2158 = vpop.f32.mrb[0].mxu0
        %v2159 = vadd.f32 %v1374, %v2158
        %v2160 = vpop.f32.mrb[0].mxu0
        %2161 = vmatprep.mubr.f32.mxu0 0.0
        %2162 = vmatmul.mubr.f32.gmra.mrb[0].mxu0 %v568
        %v2163 = vpop.f32.mrb[0].mxu0
        %v2164 = vadd.f32 %v1379, %v2163
        %v2165 = vpop.f32.mrb[0].mxu0
        %2166 = vmatprep.mubr.f32.mxu0 0.0
        %2167 = vmatmul.mubr.f32.gmra.mrb[0].mxu0 %v571
        %v2168 = vpop.f32.mrb[0].mxu0
        %v2169 = vadd.f32 %v1384, %v2168
        %v2170 = vpop.f32.mrb[0].mxu0
        %2171 = vmatprep.mubr.f32.mxu0 0.0
        %2172 = vmatmul.mubr.f32.gmra.mrb[0].mxu0 %v574
        %v2173 = vpop.f32.mrb[0].mxu0
        %v2174 = vadd.f32 %v1389, %v2173
        %v2175 = vpop.f32.mrb[0].mxu0
        %2176 = vmatprep.mubr.f32.mxu0 0.0
        %2177 = vmatmul.mubr.f32.gmra.mrb[0].mxu0 %v577
        %v2178 = vpop.f32.mrb[0].mxu0
        %v2179 = vadd.f32 %v1394, %v2178
        %v2180 = vpop.f32.mrb[0].mxu0
        %2181 = vmatprep.mubr.f32.mxu0 0.0
        %2182 = vmatmul.mubr.f32.gmra.mrb[0].mxu0 %v580
        %v2183 = vpop.f32.mrb[0].mxu0
        %v2184 = vadd.f32 %v1399, %v2183
        %v2185 = vpop.f32.mrb[0].mxu0
        %2186 = vmatprep.mubr.f32.mxu0 0.0
        %2187 = vmatmul.mubr.f32.gmra.mrb[0].mxu0 %v583
        %v2188 = vpop.f32.mrb[0].mxu0
        %v2189 = vadd.f32 %v1404, %v2188
        %v2190 = vpop.f32.mrb[0].mxu0
        %2191 = vmatprep.mubr.f32.mxu0 0.0
        %2192 = vmatmul.mubr.f32.gmra.mrb[0].mxu0 %v586
        %v2193 = vpop.f32.mrb[0].mxu0
        %v2194 = vadd.f32 %v1409, %v2193
        %v2195 = vpop.f32.mrb[0].mxu0
        %2196 = vmatprep.mubr.f32.mxu0 0.0
        %2197 = vmatmul.mubr.f32.gmra.mrb[0].mxu0 %v589
        %v2198 = vpop.f32.mrb[0].mxu0
        %v2199 = vadd.f32 %v1414, %v2198
        %v2200 = vpop.f32.mrb[0].mxu0
        %2201 = vmatprep.mubr.f32.mxu0 0.0
        %2202 = vmatmul.mubr.f32.gmra.mrb[0].mxu0 %v592
        %v2203 = vpop.f32.mrb[0].mxu0
        %v2204 = vadd.f32 %v1419, %v2203
        %v2205 = vpop.f32.mrb[0].mxu0
        %2206 = vmatprep.mubr.f32.mxu0 0.0
        %2207 = vmatmul.mubr.f32.gmra.mrb[0].mxu0 %v595
        %v2208 = vpop.f32.mrb[0].mxu0
        %v2209 = vadd.f32 %v1424, %v2208
        %v2210 = vpop.f32.mrb[0].mxu0
        %2211 = vmatprep.mubr.f32.mxu0 0.0
        %2212 = vmatmul.mubr.f32.gmra.mrb[0].mxu0 %v598
        %v2213 = vpop.f32.mrb[0].mxu0
        %v2214 = vadd.f32 %v1429, %v2213
        %v2215 = vpop.f32.mrb[0].mxu0
        %2216 = vdwg.mxu0
        %vm2217 = vcmask 400384
        %2218 = vst.msk [vmem:[%s165] sm:$0xff] %vm2217, %v1499
        %2219 = vst.msk [vmem:[%s165 + $0x8] sm:$0xff] %vm2217, %v1504
        %2220 = vst.msk [vmem:[%s165 + $0x10] sm:$0xff] %vm2217, %v1509
        %2221 = vst.msk [vmem:[%s165 + $0x18] sm:$0xff] %vm2217, %v1514
        %2222 = vst.msk [vmem:[%s165 + $0x20] sm:$0xff] %vm2217, %v1519
        %2223 = vst.msk [vmem:[%s165 + $0x28] sm:$0xff] %vm2217, %v1524
        %2224 = vst.msk [vmem:[%s165 + $0x30] sm:$0xff] %vm2217, %v1529
        %2225 = vst.msk [vmem:[%s165 + $0x38] sm:$0xff] %vm2217, %v1534
        %2226 = vst.msk [vmem:[%s165 + $0x40] sm:$0xff] %vm2217, %v1539
        %2227 = vst.msk [vmem:[%s165 + $0x48] sm:$0xff] %vm2217, %v1544
        %2228 = vst.msk [vmem:[%s165 + $0x50] sm:$0xff] %vm2217, %v1549
        %2229 = vst.msk [vmem:[%s165 + $0x58] sm:$0xff] %vm2217, %v1554
        %2230 = vst.msk [vmem:[%s165 + $0x60] sm:$0xff] %vm2217, %v1559
        %2231 = vst.msk [vmem:[%s165 + $0x68] sm:$0xff] %vm2217, %v1564
        %2232 = vst.msk [vmem:[%s165 + $0x70] sm:$0xff] %vm2217, %v1569
        %2233 = vst.msk [vmem:[%s165 + $0x78] sm:$0xff] %vm2217, %v1574
        %2234 = vst.msk [vmem:[%s165 + $0x80] sm:$0xff] %vm2217, %v1579
        %2235 = vst.msk [vmem:[%s165 + $0x88] sm:$0xff] %vm2217, %v1584
        %2236 = vst.msk [vmem:[%s165 + $0x90] sm:$0xff] %vm2217, %v1589
        %2237 = vst.msk [vmem:[%s165 + $0x98] sm:$0xff] %vm2217, %v1594
        %2238 = vst.msk [vmem:[%s165 + $0xa0] sm:$0xff] %vm2217, %v1599
        %2239 = vst.msk [vmem:[%s165 + $0xa8] sm:$0xff] %vm2217, %v1604
        %2240 = vst.msk [vmem:[%s165 + $0xb0] sm:$0xff] %vm2217, %v1609
        %2241 = vst.msk [vmem:[%s165 + $0xb8] sm:$0xff] %vm2217, %v1614
        %2242 = vst.msk [vmem:[%s165 + $0xc0] sm:$0xff] %vm2217, %v1619
        %2243 = vst.msk [vmem:[%s165 + $0xc8] sm:$0xff] %vm2217, %v1624
        %2244 = vst.msk [vmem:[%s165 + $0xd0] sm:$0xff] %vm2217, %v1629
        %2245 = vst.msk [vmem:[%s165 + $0xd8] sm:$0xff] %vm2217, %v1634
        %2246 = vst.msk [vmem:[%s165 + $0xe0] sm:$0xff] %vm2217, %v1639
        %2247 = vst.msk [vmem:[%s165 + $0xe8] sm:$0xff] %vm2217, %v1644
        %2248 = vst.msk [vmem:[%s165 + $0xf0] sm:$0xff] %vm2217, %v1649
        %2249 = vst.msk [vmem:[%s165 + $0xf8] sm:$0xff] %vm2217, %v1654
        %2250 = vst.msk [vmem:[%s165 + $0x100] sm:$0xff] %vm2217, %v1659
        %2251 = vst.msk [vmem:[%s165 + $0x108] sm:$0xff] %vm2217, %v1664
        %2252 = vst.msk [vmem:[%s165 + $0x110] sm:$0xff] %vm2217, %v1669
        %2253 = vst.msk [vmem:[%s165 + $0x118] sm:$0xff] %vm2217, %v1674
        %2254 = vst.msk [vmem:[%s165 + $0x120] sm:$0xff] %vm2217, %v1679
        %2255 = vst.msk [vmem:[%s165 + $0x128] sm:$0xff] %vm2217, %v1684
        %2256 = vst.msk [vmem:[%s165 + $0x130] sm:$0xff] %vm2217, %v1689
        %2257 = vst.msk [vmem:[%s165 + $0x138] sm:$0xff] %vm2217, %v1694
        %2258 = vst.msk [vmem:[%s165 + $0x140] sm:$0xff] %vm2217, %v1699
        %2259 = vst.msk [vmem:[%s165 + $0x148] sm:$0xff] %vm2217, %v1704
        %2260 = vst.msk [vmem:[%s165 + $0x150] sm:$0xff] %vm2217, %v1709
        %2261 = vst.msk [vmem:[%s165 + $0x158] sm:$0xff] %vm2217, %v1714
        %2262 = vst.msk [vmem:[%s165 + $0x160] sm:$0xff] %vm2217, %v1719
        %2263 = vst.msk [vmem:[%s165 + $0x168] sm:$0xff] %vm2217, %v1724
        %2264 = vst.msk [vmem:[%s165 + $0x170] sm:$0xff] %vm2217, %v1729
        %2265 = vst.msk [vmem:[%s165 + $0x178] sm:$0xff] %vm2217, %v1734
        %2266 = vst.msk [vmem:[%s165 + $0x180] sm:$0xff] %vm2217, %v1739
        %2267 = vst.msk [vmem:[%s165 + $0x188] sm:$0xff] %vm2217, %v1744
        %2268 = vst.msk [vmem:[%s165 + $0x190] sm:$0xff] %vm2217, %v1749
        %2269 = vst.msk [vmem:[%s165 + $0x198] sm:$0xff] %vm2217, %v1754
        %2270 = vst.msk [vmem:[%s165 + $0x1a0] sm:$0xff] %vm2217, %v1759
        %2271 = vst.msk [vmem:[%s165 + $0x1a8] sm:$0xff] %vm2217, %v1764
        %2272 = vst.msk [vmem:[%s165 + $0x1b0] sm:$0xff] %vm2217, %v1769
        %2273 = vst.msk [vmem:[%s165 + $0x1b8] sm:$0xff] %vm2217, %v1774
        %2274 = vst.msk [vmem:[%s165 + $0x1c0] sm:$0xff] %vm2217, %v1779
        %2275 = vst.msk [vmem:[%s165 + $0x1c8] sm:$0xff] %vm2217, %v1784
        %2276 = vst.msk [vmem:[%s165 + $0x1d0] sm:$0xff] %vm2217, %v1789
        %2277 = vst.msk [vmem:[%s165 + $0x1d8] sm:$0xff] %vm2217, %v1794
        %2278 = vst.msk [vmem:[%s165 + $0x1e0] sm:$0xff] %vm2217, %v1799
        %2279 = vst.msk [vmem:[%s165 + $0x1e8] sm:$0xff] %vm2217, %v1804
        %2280 = vst.msk [vmem:[%s165 + $0x1f0] sm:$0xff] %vm2217, %v1809
        %2281 = vst.msk [vmem:[%s165 + $0x1f8] sm:$0xff] %vm2217, %v1814
        %2282 = vst.msk [vmem:[%s165 + $0x200] sm:$0xff] %vm2217, %v1819
        %2283 = vst.msk [vmem:[%s165 + $0x208] sm:$0xff] %vm2217, %v1824
        %2284 = vst.msk [vmem:[%s165 + $0x210] sm:$0xff] %vm2217, %v1829
        %2285 = vst.msk [vmem:[%s165 + $0x218] sm:$0xff] %vm2217, %v1834
        %2286 = vst.msk [vmem:[%s165 + $0x220] sm:$0xff] %vm2217, %v1839
        %2287 = vst.msk [vmem:[%s165 + $0x228] sm:$0xff] %vm2217, %v1844
        %2288 = vst.msk [vmem:[%s165 + $0x230] sm:$0xff] %vm2217, %v1849
        %2289 = vst.msk [vmem:[%s165 + $0x238] sm:$0xff] %vm2217, %v1854
        %2290 = vst.msk [vmem:[%s165 + $0x240] sm:$0xff] %vm2217, %v1859
        %2291 = vst.msk [vmem:[%s165 + $0x248] sm:$0xff] %vm2217, %v1864
        %2292 = vst.msk [vmem:[%s165 + $0x250] sm:$0xff] %vm2217, %v1869
        %2293 = vst.msk [vmem:[%s165 + $0x258] sm:$0xff] %vm2217, %v1874
        %2294 = vst.msk [vmem:[%s165 + $0x260] sm:$0xff] %vm2217, %v1879
        %2295 = vst.msk [vmem:[%s165 + $0x268] sm:$0xff] %vm2217, %v1884
        %2296 = vst.msk [vmem:[%s165 + $0x270] sm:$0xff] %vm2217, %v1889
        %2297 = vst.msk [vmem:[%s165 + $0x278] sm:$0xff] %vm2217, %v1894
        %2298 = vst.msk [vmem:[%s165 + $0x280] sm:$0xff] %vm2217, %v1899
        %2299 = vst.msk [vmem:[%s165 + $0x288] sm:$0xff] %vm2217, %v1904
        %2300 = vst.msk [vmem:[%s165 + $0x290] sm:$0xff] %vm2217, %v1909
        %2301 = vst.msk [vmem:[%s165 + $0x298] sm:$0xff] %vm2217, %v1914
        %2302 = vst.msk [vmem:[%s165 + $0x2a0] sm:$0xff] %vm2217, %v1919
        %2303 = vst.msk [vmem:[%s165 + $0x2a8] sm:$0xff] %vm2217, %v1924
        %2304 = vst.msk [vmem:[%s165 + $0x2b0] sm:$0xff] %vm2217, %v1929
        %2305 = vst.msk [vmem:[%s165 + $0x2b8] sm:$0xff] %vm2217, %v1934
        %2306 = vst.msk [vmem:[%s165 + $0x2c0] sm:$0xff] %vm2217, %v1939
        %2307 = vst.msk [vmem:[%s165 + $0x2c8] sm:$0xff] %vm2217, %v1944
        %2308 = vst.msk [vmem:[%s165 + $0x2d0] sm:$0xff] %vm2217, %v1949
        %2309 = vst.msk [vmem:[%s165 + $0x2d8] sm:$0xff] %vm2217, %v1954
        %2310 = vst.msk [vmem:[%s165 + $0x2e0] sm:$0xff] %vm2217, %v1959
        %2311 = vst.msk [vmem:[%s165 + $0x2e8] sm:$0xff] %vm2217, %v1964
        %2312 = vst.msk [vmem:[%s165 + $0x2f0] sm:$0xff] %vm2217, %v1969
        %2313 = vst.msk [vmem:[%s165 + $0x2f8] sm:$0xff] %vm2217, %v1974
        %2314 = vst.msk [vmem:[%s165 + $0x300] sm:$0xff] %vm2217, %v1979
        %2315 = vst.msk [vmem:[%s165 + $0x308] sm:$0xff] %vm2217, %v1984
        %2316 = vst.msk [vmem:[%s165 + $0x310] sm:$0xff] %vm2217, %v1989
        %2317 = vst.msk [vmem:[%s165 + $0x318] sm:$0xff] %vm2217, %v1994
        %2318 = vst.msk [vmem:[%s165 + $0x320] sm:$0xff] %vm2217, %v1999
        %2319 = vst.msk [vmem:[%s165 + $0x328] sm:$0xff] %vm2217, %v2004
        %2320 = vst.msk [vmem:[%s165 + $0x330] sm:$0xff] %vm2217, %v2009
        %2321 = vst.msk [vmem:[%s165 + $0x338] sm:$0xff] %vm2217, %v2014
        %2322 = vst.msk [vmem:[%s165 + $0x340] sm:$0xff] %vm2217, %v2019
        %2323 = vst.msk [vmem:[%s165 + $0x348] sm:$0xff] %vm2217, %v2024
        %2324 = vst.msk [vmem:[%s165 + $0x350] sm:$0xff] %vm2217, %v2029
        %2325 = vst.msk [vmem:[%s165 + $0x358] sm:$0xff] %vm2217, %v2034
        %2326 = vst.msk [vmem:[%s165 + $0x360] sm:$0xff] %vm2217, %v2039
        %2327 = vst.msk [vmem:[%s165 + $0x368] sm:$0xff] %vm2217, %v2044
        %2328 = vst.msk [vmem:[%s165 + $0x370] sm:$0xff] %vm2217, %v2049
        %2329 = vst.msk [vmem:[%s165 + $0x378] sm:$0xff] %vm2217, %v2054
        %2330 = vst.msk [vmem:[%s165 + $0x380] sm:$0xff] %vm2217, %v2059
        %2331 = vst.msk [vmem:[%s165 + $0x388] sm:$0xff] %vm2217, %v2064
        %2332 = vst.msk [vmem:[%s165 + $0x390] sm:$0xff] %vm2217, %v2069
        %2333 = vst.msk [vmem:[%s165 + $0x398] sm:$0xff] %vm2217, %v2074
        %2334 = vst.msk [vmem:[%s165 + $0x3a0] sm:$0xff] %vm2217, %v2079
        %2335 = vst.msk [vmem:[%s165 + $0x3a8] sm:$0xff] %vm2217, %v2084
        %2336 = vst.msk [vmem:[%s165 + $0x3b0] sm:$0xff] %vm2217, %v2089
        %2337 = vst.msk [vmem:[%s165 + $0x3b8] sm:$0xff] %vm2217, %v2094
        %2338 = vst.msk [vmem:[%s165 + $0x3c0] sm:$0xff] %vm2217, %v2099
        %2339 = vst.msk [vmem:[%s165 + $0x3c8] sm:$0xff] %vm2217, %v2104
        %2340 = vst.msk [vmem:[%s165 + $0x3d0] sm:$0xff] %vm2217, %v2109
        %2341 = vst.msk [vmem:[%s165 + $0x3d8] sm:$0xff] %vm2217, %v2114
        %2342 = vst.msk [vmem:[%s165 + $0x3e0] sm:$0xff] %vm2217, %v2119
        %2343 = vst.msk [vmem:[%s165 + $0x3e8] sm:$0xff] %vm2217, %v2124
        %2344 = vst.msk [vmem:[%s165 + $0x3f0] sm:$0xff] %vm2217, %v2129
        %2345 = vst.msk [vmem:[%s165 + $0x3f8] sm:$0xff] %vm2217, %v2134
        %2346 = vst.msk [vmem:[%s165 + $0x400] sm:$0xff] %vm2217, %v2139
        %2347 = vst.msk [vmem:[%s165 + $0x408] sm:$0xff] %vm2217, %v2144
        %2348 = vst.msk [vmem:[%s165 + $0x410] sm:$0xff] %vm2217, %v2149
        %2349 = vst.msk [vmem:[%s165 + $0x418] sm:$0xff] %vm2217, %v2154
        %2350 = vst.msk [vmem:[%s165 + $0x420] sm:$0xff] %vm2217, %v2159
        %2351 = vst.msk [vmem:[%s165 + $0x428] sm:$0xff] %vm2217, %v2164
        %2352 = vst.msk [vmem:[%s165 + $0x430] sm:$0xff] %vm2217, %v2169
        %2353 = vst.msk [vmem:[%s165 + $0x438] sm:$0xff] %vm2217, %v2174
        %2354 = vst.msk [vmem:[%s165 + $0x440] sm:$0xff] %vm2217, %v2179
        %2355 = vst.msk [vmem:[%s165 + $0x448] sm:$0xff] %vm2217, %v2184
        %2356 = vst.msk [vmem:[%s165 + $0x450] sm:$0xff] %vm2217, %v2189
        %2357 = vst.msk [vmem:[%s165 + $0x458] sm:$0xff] %vm2217, %v2194
        %2358 = vst.msk [vmem:[%s165 + $0x460] sm:$0xff] %vm2217, %v2199
        %2359 = vst.msk [vmem:[%s165 + $0x468] sm:$0xff] %vm2217, %v2204
        %2360 = vst.msk [vmem:[%s165 + $0x470] sm:$0xff] %vm2217, %v2209
        %2361 = vst.msk [vmem:[%s165 + $0x478] sm:$0xff] %vm2217, %v2214
        %s2362 = smul.u32 144, %s16
        %p2363 = scmp.lt.s32.totalorder %s2362, 287
        %s2364 = scalar_select %p2363, %s2362, 287
        %s2365 = smul.addr %s2364, 8
        %s2366 = scalar_lea.vmem %s2, %s2365
        // Predicated region
        $region33: #{tpu_custom_call.1} parent=27 // pred_check
          %p2367 = pneg %p81
        $region34: #{tpu_custom_call.1} parent=27 // pred_check_branch
          %2369 = sbr.rel (%p2367) target = $region36
        $region35: #{tpu_custom_call.1} parent=27 // pred_region
          %s2370 = smul.u32 144, %s16
        $region36: #{tpu_custom_call.1} parent=27 // pred_fallthru
          _
      $region28: #{tpu_custom_call.1} parent=5 // pred_fallthru
        _
      %p2371 = scmp.le.s32.totalorder 2, %s11
      // Predicated region
      $region37: #{tpu_custom_call.1} parent=5 // pred_check
        %p2372 = pneg %p2371
      $region38: #{tpu_custom_call.1} parent=5 // pred_check_branch
        %2374 = sbr.rel (%p2372) target = $region40
      $region39: #{tpu_custom_call.1} parent=5 // pred_region
        %s2375 = ssub.s32 %s11, 2
        // Predicated region
        $region41: #{tpu_custom_call.1} parent=39 // pred_check
          %p2376 = pneg %p87
        $region42: #{tpu_custom_call.1} parent=39 // pred_check_branch
          %2378 = sbr.rel (%p2376) target = $region44
        $region43: #{tpu_custom_call.1} parent=39 // pred_region
          %s2379 = smul.u32 144, %s17
          %p2380 = scmp.lt.s32.totalorder %s2379, 287
          %s2381 = scalar_select %p2380, %s2379, 287
          %s2382 = smul.addr %s2381, 8
          %s2383 = scalar_lea.vmem %s2, %s2382
        $region44: #{tpu_custom_call.1} parent=39 // pred_fallthru
          _
      $region40: #{tpu_custom_call.1} parent=5 // pred_fallthru
        _
    $region6: #{tpu_custom_call.1} parent=1 // loop_footer
      %s15 = sadd.s32 1, %s11
    $region7: #{tpu_custom_call.1} parent=1 // loop_footer_branch
      %10 = sbr.rel target = $region3
    $region8: #{tpu_custom_call.1} parent=1 // loop_exit
      _
    %2384 = vsyncpa [#allocation3], 1
    %s2385 = scalar_lea.sflag [#allocation3], 1
    %2386 = vsyncpa %s2385, 1

</llo_original>
